<compile_context>
chip_gen: v5e
topology: v5e:2x2
jax: 0.10.0
libtpu: 0.0.40
codegen_flags: <defaults>
</compile_context>

<pallas_src>
import math

import jax
import jax.numpy as jnp
from jax.experimental import pallas as pl
from jax.experimental.pallas import tpu as pltpu

NUM_NUMERICAL = 10
NUM_CATEGORICAL = 3          # embedding table rows
CAT_EMBED_DIM = 32
TEMPORAL_WINDOW = 5
HIDDEN_DIMS = (256, 128, 64)
D_MODEL = NUM_NUMERICAL + CAT_EMBED_DIM        # 42
FLAT_DIM = D_MODEL * TEMPORAL_WINDOW           # 210
GROUP_LANES = 128                              # lane-aligned slot per time step
BN_EPS = 1e-5


def _round_up(x, m):
    return (x + m - 1) // m * m


def _num_tensorcores():
    """Heuristic TensorCore count per chip (v7x/v4/v5p expose 2, v5e/v6e expose 1)."""
    try:
        kind = jax.devices()[0].device_kind.lower()
    except Exception:
        return 1
    return 2 if any(tag in kind for tag in ("v7", "v4", "v5p")) else 1


def _pick_batch_tile(B, block_b, n_cores):
    """Largest batch tile <= block_b, with >= n_cores grid steps when B allows it."""
    n_blocks = max(-(-B // block_b), n_cores if B >= 16 * n_cores else 1)
    tb = _round_up(-(-B // n_blocks), 16)
    return min(tb, block_b)


def _failure_predictor_kernel(num_ref, cat_ref, wqkv_n_ref, wqkv_c_ref, bqkv_ref,
                              w1_ref, b1_ref, w2_ref, b2_ref, w3_ref, b3_ref,
                              wo_ref, bo_ref, out_ref, ctx_scratch):
    # num_ref: (S*TB, 10) bf16 (time-major within the block)
    # cat_ref: (TB, 32) bf16    ctx_scratch: (TB, S*128) bf16    out_ref: (TB, 1) f32
    S = TEMPORAL_WINDOW
    TB = num_ref.shape[0] // S
    F = num_ref.shape[1]
    D = wqkv_n_ref.shape[2]                       # 42
    GL = ctx_scratch.shape[1] // S                # 128
    inv_scale = 1.0 / math.sqrt(D)
    f32 = jnp.float32
    bf16 = jnp.bfloat16

    cat = cat_ref[...]                            # (TB, 32) bf16

    # Time-invariant categorical contribution to Q/K/V (incl. bias): 3 matmuls/block.
    q_cat = jnp.dot(cat, wqkv_c_ref[0], preferred_element_type=f32) + bqkv_ref[0]
    k_cat = jnp.dot(cat, wqkv_c_ref[1], preferred_element_type=f32) + bqkv_ref[1]
    v_cat = jnp.dot(cat, wqkv_c_ref[2], preferred_element_type=f32) + bqkv_ref[2]

    # Numerical contribution: time axis merged into M -> 3 matmuls instead of 15.
    num_all = num_ref[...]                        # (S*TB, 10) bf16
    q_num = jnp.dot(num_all, wqkv_n_ref[0], preferred_element_type=f32)   # (S*TB, 42)
    k_num = jnp.dot(num_all, wqkv_n_ref[1], preferred_element_type=f32)
    v_num = jnp.dot(num_all, wqkv_n_ref[2], preferred_element_type=f32)

    # K tiles (reused across all query steps).
    ks = [k_num[sk * TB:(sk + 1) * TB, :] + k_cat for sk in range(S)]     # (TB,42) f32

    # Scores + softmax, query-step outer: each Q tile is produced, consumed, and dies.
    p_norm = []                                   # [sq][sk] -> (TB, 1) f32 normalized
    for sq in range(S):
        q_sq = q_num[sq * TB:(sq + 1) * TB, :] + q_cat
        scores = [jnp.sum(q_sq * ks[sk], axis=-1, keepdims=True) * inv_scale
                  for sk in range(S)]
        m = scores[0]
        for sk in range(1, S):
            m = jnp.maximum(m, scores[sk])
        p = [jnp.exp(scores[sk] - m) for sk in range(S)]
        denom = p[0]
        for sk in range(1, S):
            denom = denom + p[sk]
        inv_denom = pl.reciprocal(denom, approx=True)     # EUP slot, skinny (TB,1)
        p_norm.append([pk * inv_denom for pk in p])

    # Context pass, key-step outer: each V tile is streamed once into S accumulators.
    ctx = [None] * S
    for sk in range(S):
        v_sk = v_num[sk * TB:(sk + 1) * TB, :] + v_cat
        for sq in range(S):
            contrib = p_norm[sq][sk] * v_sk
            ctx[sq] = contrib if ctx[sq] is None else ctx[sq] + contrib

    # Pack the S context tiles at 128-lane-aligned offsets (pad lanes zeroed) so the
    # flatten(start_dim=1) + Linear(210 -> 256) becomes a single (TB,640)@(640,256)
    # MXU matmul against the zero-row-padded W1.
    lane_pad = jnp.zeros((TB, GL - D), f32)
    for sq in range(S):
        ctx_scratch[:, sq * GL:(sq + 1) * GL] = (
            jnp.concatenate([ctx[sq], lane_pad], axis=-1).astype(bf16))

    h1 = jnp.maximum(jnp.dot(ctx_scratch[...], w1_ref[...],
                             preferred_element_type=f32) + b1_ref[...], 0.0)
    h2 = jnp.maximum(jnp.dot(h1.astype(bf16), w2_ref[...],
                             preferred_element_type=f32) + b2_ref[...], 0.0)
    h3 = jnp.maximum(jnp.dot(h2.astype(bf16), w3_ref[...],
                             preferred_element_type=f32) + b3_ref[...], 0.0)

    # Lane-dense epilogue: broadcast-multiply + lane reduce instead of an N=1 matmul.
    logits = jnp.sum(h3 * wo_ref[...], axis=-1, keepdims=True) + bo_ref[...]  # (TB, 1)
    out_ref[...] = jax.nn.sigmoid(logits)


def failure_predictor_forward(params, numerical_features, categorical_features,
                              *, block_b=512, num_tensorcores=None):
    B, S, F = numerical_features.shape
    assert S == TEMPORAL_WINDOW and F == NUM_NUMERICAL
    bf16 = jnp.bfloat16

    n_cores = _num_tensorcores() if num_tensorcores is None else num_tensorcores
    TB = _pick_batch_tile(B, block_b, n_cores)
    B_pad = _round_up(B, TB)
    num_blocks = B_pad // TB
    pad = B_pad - B

    # Glue: embedding gather, zero-padding, and the (block, time, row) layout so the
    # kernel's numerical block arrives already merged as (S*TB, 10) (no in-kernel
    # reshape needed).
    cat_emb = params["emb_w"][categorical_features]                        # (B, 32)
    cat_b = jnp.pad(cat_emb, ((0, pad), (0, 0))).astype(bf16)              # (B_pad, 32)
    num = jnp.pad(numerical_features.astype(jnp.float32),
                  ((0, pad), (0, 0), (0, 0)))                              # (B_pad, S, F)
    num = num.reshape(num_blocks, TB, S, F).transpose(0, 2, 1, 3)          # (nb, S, TB, F)
    num2d = num.reshape(num_blocks * S * TB, F).astype(bf16)               # (nb*S*TB, F)

    # Weight packing:
    #   Q/K/V split by feature group (x@W == num@W[:10] + cat@W[10:]);
    #   W1 repacked to (S*128, 256): row sq*128+d holds W1 row sq*42+d, pad rows zero;
    #   output head as a (1, 64) row for the lane-reduce epilogue.
    wq, wk, wv = params["wq"], params["wk"], params["wv"]
    w_qkv_n = jnp.stack([wq[:F], wk[:F], wv[:F]]).astype(bf16)             # (3, 10, 42)
    w_qkv_c = jnp.stack([wq[F:], wk[F:], wv[F:]]).astype(bf16)             # (3, 32, 42)
    b_qkv = jnp.stack([params["bq"], params["bk"], params["bv"]])          # (3, 1, 42)
    w1 = params["w1"].reshape(S, D_MODEL, HIDDEN_DIMS[0])
    w1_packed = jnp.zeros((S, GROUP_LANES, HIDDEN_DIMS[0]), jnp.float32)
    w1_packed = w1_packed.at[:, :D_MODEL, :].set(w1)
    w1_packed = w1_packed.reshape(S * GROUP_LANES, HIDDEN_DIMS[0]).astype(bf16)
    wo_row = params["wo"].T                                                # (1, 64) f32
    weight_args = (
        w_qkv_n, w_qkv_c, b_qkv,
        w1_packed, params["b1"],
        params["w2"].astype(bf16), params["b2"],
        params["w3"].astype(bf16), params["b3"],
        wo_row, params["bo"],
    )

    in_specs = [
        pl.BlockSpec((S * TB, F), lambda b: (b, 0)),                       # numerical
        pl.BlockSpec((TB, CAT_EMBED_DIM), lambda b: (b, 0)),               # cat embed
    ]
    for w in weight_args:                                                  # resident params
        in_specs.append(pl.BlockSpec(w.shape, lambda b, n=w.ndim: (0,) * n))

    flops_per_row = 2 * (3 * S * F * D_MODEL + 3 * CAT_EMBED_DIM * D_MODEL
                         + 2 * S * S * D_MODEL
                         + S * GROUP_LANES * HIDDEN_DIMS[0]
                         + HIDDEN_DIMS[0] * HIDDEN_DIMS[1]
                         + HIDDEN_DIMS[1] * HIDDEN_DIMS[2]
                         + HIDDEN_DIMS[2])
    weight_bytes = sum(int(w.size) * w.dtype.itemsize for w in weight_args)
    cost = pl.CostEstimate(
        flops=flops_per_row * B_pad,
        transcendentals=(S * S + S + 1) * B_pad,
        bytes_accessed=int(num2d.size) * 2 + int(cat_b.size) * 2 + weight_bytes + B_pad * 4,
    )

    out = pl.pallas_call(
        _failure_predictor_kernel,
        out_shape=jax.ShapeDtypeStruct((B_pad, 1), jnp.float32),
        grid=(num_blocks,),
        in_specs=in_specs,
        out_specs=pl.BlockSpec((TB, 1), lambda b: (b, 0)),
        scratch_shapes=[pltpu.VMEM((TB, S * GROUP_LANES), jnp.bfloat16)],
        compiler_params=pltpu.CompilerParams(dimension_semantics=("parallel",)),
        cost_estimate=cost,
    )(num2d, cat_b, *weight_args)
    return out[:B]


def _xavier_uniform(key, out_dim, in_dim):
    """torch.nn.init.xavier_uniform_ on a (out, in) Linear weight, returned as (in, out)."""
    limit = math.sqrt(6.0 / (in_dim + out_dim))
    w = jax.random.uniform(key, (out_dim, in_dim), jnp.float32, -limit, limit)
    return w.T


def init_params(seed=0):
    keys = jax.random.split(jax.random.PRNGKey(seed), 8)
    params = {}

    # FeatureEmbedding: nn.Embedding(3, 32) with xavier_uniform_
    emb_limit = math.sqrt(6.0 / (NUM_CATEGORICAL + CAT_EMBED_DIM))
    params["emb_w"] = jax.random.uniform(keys[0], (NUM_CATEGORICAL, CAT_EMBED_DIM),
                                         jnp.float32, -emb_limit, emb_limit)

    # TemporalAttention Q/K/V: Linear(42, 42), biases zero (Xavier + constant 0)
    for name, key in zip(("q", "k", "v"), keys[1:4]):
        params["w" + name] = _xavier_uniform(key, D_MODEL, D_MODEL)
        params["b" + name] = jnp.zeros((1, D_MODEL), jnp.float32)

    # Dense layers with eval-mode BatchNorm folded in:
    # gamma=1, beta=0, running_mean=0, running_var=1 -> scale = 1/sqrt(1+eps), shift = 0
    bn_scale = 1.0 / math.sqrt(1.0 + BN_EPS)
    dims = (FLAT_DIM,) + HIDDEN_DIMS
    for i, name in enumerate(("1", "2", "3")):
        params["w" + name] = _xavier_uniform(keys[4 + i], dims[i + 1], dims[i]) * bn_scale
        params["b" + name] = jnp.zeros((1, dims[i + 1]), jnp.float32)

    # Output head Linear(64, 1)
    params["wo"] = _xavier_uniform(keys[7], 1, HIDDEN_DIMS[-1])
    params["bo"] = jnp.zeros((1, 1), jnp.float32)
    return params


def reference_forward(params, numerical_features, categorical_features,
                      mixed_precision=True):
    """Pure-JAX reference (eval-mode semantics).  With mixed_precision=True the hidden
    dense matmuls use bf16 operands (f32 accumulation), mirroring the kernel; the
    output head is kept in f32 in both kernel and reference (lane-reduce epilogue)."""
    B, S, _ = numerical_features.shape
    lp = jnp.bfloat16 if mixed_precision else jnp.float32
    cat = params["emb_w"][categorical_features]
    x = jnp.concatenate(
        [numerical_features.astype(jnp.float32),
         jnp.broadcast_to(cat[:, None, :], (B, S, CAT_EMBED_DIM))], axis=-1)

    def dense(a, w, b):
        return jnp.dot(a.astype(lp), w.astype(lp),
                       preferred_element_type=jnp.float32) + b

    q = dense(x, params["wq"], params["bq"])
    k = dense(x, params["wk"], params["bk"])
    v = dense(x, params["wv"], params["bv"])
    scores = jnp.sum(q[:, :, None, :] * k[:, None, :, :], axis=-1) / math.sqrt(D_MODEL)
    attn = jax.nn.softmax(scores, axis=-1)
    ctx = jnp.sum(attn[..., None] * v[:, None, :, :], axis=2)
    h = ctx.reshape(B, -1)
    h = jax.nn.relu(dense(h, params["w1"], params["b1"]))
    h = jax.nn.relu(dense(h, params["w2"], params["b2"]))
    h = jax.nn.relu(dense(h, params["w3"], params["b3"]))
    logits = jnp.dot(h, params["wo"]) + params["bo"]          # f32 head, like the kernel
    return jax.nn.sigmoid(logits)


if __name__ == "__main__":
    key = jax.random.PRNGKey(0)
    k_num, k_cat = jax.random.split(key)

    B = 2
    numerical_features = jax.random.normal(
        k_num, (B, TEMPORAL_WINDOW, NUM_NUMERICAL), jnp.float32)
    categorical_features = jax.random.randint(k_cat, (B,), 0, NUM_CATEGORICAL)

    params = init_params(0)

    fwd = jax.jit(failure_predictor_forward)
    out = jax.block_until_ready(fwd(params, numerical_features, categorical_features))
    assert out.shape == (B, 1)

    ref_mixed = reference_forward(params, numerical_features, categorical_features, True)
    ref_f32 = reference_forward(params, numerical_features, categorical_features, False)
    assert jnp.allclose(out, ref_mixed, atol=2e-3, rtol=2e-3), (out, ref_mixed)
    assert jnp.allclose(out, ref_f32, atol=5e-2), (out, ref_f32)

    print("KERNEL_OK")
</pallas_src>

<mosaic_0001>
module attributes {stable_mosaic.version = 11 : i64} {
  func.func @_failure_predictor_kernel(%arg0: i32, %arg1: memref<80x10xbf16, #tpu.memory_space<vmem>>, %arg2: memref<16x32xbf16, #tpu.memory_space<vmem>>, %arg3: memref<3x10x42xbf16, #tpu.memory_space<vmem>>, %arg4: memref<3x32x42xbf16, #tpu.memory_space<vmem>>, %arg5: memref<3x1x42xf32, #tpu.memory_space<vmem>>, %arg6: memref<640x256xbf16, #tpu.memory_space<vmem>>, %arg7: memref<1x256xf32, #tpu.memory_space<vmem>>, %arg8: memref<256x128xbf16, #tpu.memory_space<vmem>>, %arg9: memref<1x128xf32, #tpu.memory_space<vmem>>, %arg10: memref<128x64xbf16, #tpu.memory_space<vmem>>, %arg11: memref<1x64xf32, #tpu.memory_space<vmem>>, %arg12: memref<1x64xf32, #tpu.memory_space<vmem>>, %arg13: memref<1x1xf32, #tpu.memory_space<vmem>>, %arg14: memref<16x1xf32, #tpu.memory_space<vmem>>, %arg15: memref<16x640xbf16, #tpu.memory_space<vmem>>) attributes {dimension_semantics = [#tpu.dimension_semantics<parallel>], iteration_bounds = array<i64: 1>, scalar_prefetch = 0 : i64, scratch_operands = 1 : i64, tpu.core_type = #tpu.core_type<tc>, window_params = [{transform_indices = @transform_0, window_bounds = array<i64: 80, 10>}, {transform_indices = @transform_1, window_bounds = array<i64: 16, 32>}, {pipeline_mode = #tpu.pipeline_mode<synchronous>, transform_indices = @transform_2, window_bounds = array<i64: 3, 10, 42>}, {pipeline_mode = #tpu.pipeline_mode<synchronous>, transform_indices = @transform_3, window_bounds = array<i64: 3, 32, 42>}, {pipeline_mode = #tpu.pipeline_mode<synchronous>, transform_indices = @transform_4, window_bounds = array<i64: 3, 1, 42>}, {pipeline_mode = #tpu.pipeline_mode<synchronous>, transform_indices = @transform_5, window_bounds = array<i64: 640, 256>}, {pipeline_mode = #tpu.pipeline_mode<synchronous>, transform_indices = @transform_6, window_bounds = array<i64: 1, 256>}, {pipeline_mode = #tpu.pipeline_mode<synchronous>, transform_indices = @transform_7, window_bounds = array<i64: 256, 128>}, {pipeline_mode = #tpu.pipeline_mode<synchronous>, transform_indices = @transform_8, window_bounds = array<i64: 1, 128>}, {pipeline_mode = #tpu.pipeline_mode<synchronous>, transform_indices = @transform_9, window_bounds = array<i64: 128, 64>}, {pipeline_mode = #tpu.pipeline_mode<synchronous>, transform_indices = @transform_10, window_bounds = array<i64: 1, 64>}, {pipeline_mode = #tpu.pipeline_mode<synchronous>, transform_indices = @transform_11, window_bounds = array<i64: 1, 64>}, {pipeline_mode = #tpu.pipeline_mode<synchronous>, transform_indices = @transform_12, window_bounds = array<i64: 1, 1>}, {transform_indices = @transform_13, window_bounds = array<i64: 16, 1>}]} {
    %c0 = arith.constant 0 : index
    %c0_0 = arith.constant 0 : index
    %0 = vector.load %arg2[%c0, %c0_0] : memref<16x32xbf16, #tpu.memory_space<vmem>>, vector<16x32xbf16>
    %c0_1 = arith.constant 0 : index
    %c0_2 = arith.constant 0 : index
    %c0_3 = arith.constant 0 : index
    %1 = vector.load %arg4[%c0_1, %c0_2, %c0_3] : memref<3x32x42xbf16, #tpu.memory_space<vmem>>, vector<1x32x42xbf16>
    %2 = vector.shape_cast %1 : vector<1x32x42xbf16> to vector<32x42xbf16>
    %cst = arith.constant dense<0.000000e+00> : vector<16x42xf32>
    %3 = tpu.matmul %0, %2, %cst {dimension_numbers = #tpu.dot_dimension_numbers<[1], [0], [0], [1], [0, 0, 1, 1], [], []>} : vector<16x32xbf16>, vector<32x42xbf16>, vector<16x42xf32> -> vector<16x42xf32>
    %c0_4 = arith.constant 0 : index
    %c0_5 = arith.constant 0 : index
    %c0_6 = arith.constant 0 : index
    %4 = vector.load %arg5[%c0_4, %c0_5, %c0_6] : memref<3x1x42xf32, #tpu.memory_space<vmem>>, vector<1x1x42xf32>
    %5 = vector.shape_cast %4 : vector<1x1x42xf32> to vector<1x42xf32>
    %6 = vector.broadcast %5 : vector<1x42xf32> to vector<16x42xf32>
    %7 = arith.addf %3, %6 : vector<16x42xf32>
    %c1 = arith.constant 1 : index
    %c0_7 = arith.constant 0 : index
    %c0_8 = arith.constant 0 : index
    %8 = vector.load %arg4[%c1, %c0_7, %c0_8] : memref<3x32x42xbf16, #tpu.memory_space<vmem>>, vector<1x32x42xbf16>
    %9 = vector.shape_cast %8 : vector<1x32x42xbf16> to vector<32x42xbf16>
    %cst_9 = arith.constant dense<0.000000e+00> : vector<16x42xf32>
    %10 = tpu.matmul %0, %9, %cst_9 {dimension_numbers = #tpu.dot_dimension_numbers<[1], [0], [0], [1], [0, 0, 1, 1], [], []>} : vector<16x32xbf16>, vector<32x42xbf16>, vector<16x42xf32> -> vector<16x42xf32>
    %c1_10 = arith.constant 1 : index
    %c0_11 = arith.constant 0 : index
    %c0_12 = arith.constant 0 : index
    %11 = vector.load %arg5[%c1_10, %c0_11, %c0_12] : memref<3x1x42xf32, #tpu.memory_space<vmem>>, vector<1x1x42xf32>
    %12 = vector.shape_cast %11 : vector<1x1x42xf32> to vector<1x42xf32>
    %13 = vector.broadcast %12 : vector<1x42xf32> to vector<16x42xf32>
    %14 = arith.addf %10, %13 : vector<16x42xf32>
    %c2 = arith.constant 2 : index
    %c0_13 = arith.constant 0 : index
    %c0_14 = arith.constant 0 : index
    %15 = vector.load %arg4[%c2, %c0_13, %c0_14] : memref<3x32x42xbf16, #tpu.memory_space<vmem>>, vector<1x32x42xbf16>
    %16 = vector.shape_cast %15 : vector<1x32x42xbf16> to vector<32x42xbf16>
    %cst_15 = arith.constant dense<0.000000e+00> : vector<16x42xf32>
    %17 = tpu.matmul %0, %16, %cst_15 {dimension_numbers = #tpu.dot_dimension_numbers<[1], [0], [0], [1], [0, 0, 1, 1], [], []>} : vector<16x32xbf16>, vector<32x42xbf16>, vector<16x42xf32> -> vector<16x42xf32>
    %c2_16 = arith.constant 2 : index
    %c0_17 = arith.constant 0 : index
    %c0_18 = arith.constant 0 : index
    %18 = vector.load %arg5[%c2_16, %c0_17, %c0_18] : memref<3x1x42xf32, #tpu.memory_space<vmem>>, vector<1x1x42xf32>
    %19 = vector.shape_cast %18 : vector<1x1x42xf32> to vector<1x42xf32>
    %20 = vector.broadcast %19 : vector<1x42xf32> to vector<16x42xf32>
    %21 = arith.addf %17, %20 : vector<16x42xf32>
    %c0_19 = arith.constant 0 : index
    %c0_20 = arith.constant 0 : index
    %22 = vector.load %arg1[%c0_19, %c0_20] : memref<80x10xbf16, #tpu.memory_space<vmem>>, vector<80x10xbf16>
    %c0_21 = arith.constant 0 : index
    %c0_22 = arith.constant 0 : index
    %c0_23 = arith.constant 0 : index
    %23 = vector.load %arg3[%c0_21, %c0_22, %c0_23] : memref<3x10x42xbf16, #tpu.memory_space<vmem>>, vector<1x10x42xbf16>
    %24 = vector.shape_cast %23 : vector<1x10x42xbf16> to vector<10x42xbf16>
    %cst_24 = arith.constant dense<0.000000e+00> : vector<80x42xf32>
    %25 = tpu.matmul %22, %24, %cst_24 {dimension_numbers = #tpu.dot_dimension_numbers<[1], [0], [0], [1], [0, 0, 1, 1], [], []>} : vector<80x10xbf16>, vector<10x42xbf16>, vector<80x42xf32> -> vector<80x42xf32>
    %c1_25 = arith.constant 1 : index
    %c0_26 = arith.constant 0 : index
    %c0_27 = arith.constant 0 : index
    %26 = vector.load %arg3[%c1_25, %c0_26, %c0_27] : memref<3x10x42xbf16, #tpu.memory_space<vmem>>, vector<1x10x42xbf16>
    %27 = vector.shape_cast %26 : vector<1x10x42xbf16> to vector<10x42xbf16>
    %cst_28 = arith.constant dense<0.000000e+00> : vector<80x42xf32>
    %28 = tpu.matmul %22, %27, %cst_28 {dimension_numbers = #tpu.dot_dimension_numbers<[1], [0], [0], [1], [0, 0, 1, 1], [], []>} : vector<80x10xbf16>, vector<10x42xbf16>, vector<80x42xf32> -> vector<80x42xf32>
    %c2_29 = arith.constant 2 : index
    %c0_30 = arith.constant 0 : index
    %c0_31 = arith.constant 0 : index
    %29 = vector.load %arg3[%c2_29, %c0_30, %c0_31] : memref<3x10x42xbf16, #tpu.memory_space<vmem>>, vector<1x10x42xbf16>
    %30 = vector.shape_cast %29 : vector<1x10x42xbf16> to vector<10x42xbf16>
    %cst_32 = arith.constant dense<0.000000e+00> : vector<80x42xf32>
    %31 = tpu.matmul %22, %30, %cst_32 {dimension_numbers = #tpu.dot_dimension_numbers<[1], [0], [0], [1], [0, 0, 1, 1], [], []>} : vector<80x10xbf16>, vector<10x42xbf16>, vector<80x42xf32> -> vector<80x42xf32>
    %32 = vector.extract_strided_slice %28 {offsets = [0, 0], sizes = [16, 42], strides = [1, 1]} : vector<80x42xf32> to vector<16x42xf32>
    %33 = arith.addf %32, %14 : vector<16x42xf32>
    %34 = vector.extract_strided_slice %28 {offsets = [16, 0], sizes = [16, 42], strides = [1, 1]} : vector<80x42xf32> to vector<16x42xf32>
    %35 = arith.addf %34, %14 : vector<16x42xf32>
    %36 = vector.extract_strided_slice %28 {offsets = [32, 0], sizes = [16, 42], strides = [1, 1]} : vector<80x42xf32> to vector<16x42xf32>
    %37 = arith.addf %36, %14 : vector<16x42xf32>
    %38 = vector.extract_strided_slice %28 {offsets = [48, 0], sizes = [16, 42], strides = [1, 1]} : vector<80x42xf32> to vector<16x42xf32>
    %39 = arith.addf %38, %14 : vector<16x42xf32>
    %40 = vector.extract_strided_slice %28 {offsets = [64, 0], sizes = [16, 42], strides = [1, 1]} : vector<80x42xf32> to vector<16x42xf32>
    %41 = arith.addf %40, %14 : vector<16x42xf32>
    %42 = vector.extract_strided_slice %25 {offsets = [0, 0], sizes = [16, 42], strides = [1, 1]} : vector<80x42xf32> to vector<16x42xf32>
    %43 = arith.addf %42, %7 : vector<16x42xf32>
    %44 = arith.mulf %43, %33 : vector<16x42xf32>
    %cst_33 = arith.constant dense<0.000000e+00> : vector<16xf32>
    %45 = vector.multi_reduction <add>, %44, %cst_33 [1] : vector<16x42xf32> to vector<16xf32>
    %46 = vector.shape_cast %45 : vector<16xf32> to vector<16x1xf32>
    %cst_34 = arith.constant 0.154303357 : f32
    %47 = vector.broadcast %cst_34 : f32 to vector<16x1xf32>
    %48 = arith.mulf %46, %47 : vector<16x1xf32>
    %49 = arith.mulf %43, %35 : vector<16x42xf32>
    %cst_35 = arith.constant dense<0.000000e+00> : vector<16xf32>
    %50 = vector.multi_reduction <add>, %49, %cst_35 [1] : vector<16x42xf32> to vector<16xf32>
    %51 = vector.shape_cast %50 : vector<16xf32> to vector<16x1xf32>
    %cst_36 = arith.constant 0.154303357 : f32
    %52 = vector.broadcast %cst_36 : f32 to vector<16x1xf32>
    %53 = arith.mulf %51, %52 : vector<16x1xf32>
    %54 = arith.mulf %43, %37 : vector<16x42xf32>
    %cst_37 = arith.constant dense<0.000000e+00> : vector<16xf32>
    %55 = vector.multi_reduction <add>, %54, %cst_37 [1] : vector<16x42xf32> to vector<16xf32>
    %56 = vector.shape_cast %55 : vector<16xf32> to vector<16x1xf32>
    %cst_38 = arith.constant 0.154303357 : f32
    %57 = vector.broadcast %cst_38 : f32 to vector<16x1xf32>
    %58 = arith.mulf %56, %57 : vector<16x1xf32>
    %59 = arith.mulf %43, %39 : vector<16x42xf32>
    %cst_39 = arith.constant dense<0.000000e+00> : vector<16xf32>
    %60 = vector.multi_reduction <add>, %59, %cst_39 [1] : vector<16x42xf32> to vector<16xf32>
    %61 = vector.shape_cast %60 : vector<16xf32> to vector<16x1xf32>
    %cst_40 = arith.constant 0.154303357 : f32
    %62 = vector.broadcast %cst_40 : f32 to vector<16x1xf32>
    %63 = arith.mulf %61, %62 : vector<16x1xf32>
    %64 = arith.mulf %43, %41 : vector<16x42xf32>
    %cst_41 = arith.constant dense<0.000000e+00> : vector<16xf32>
    %65 = vector.multi_reduction <add>, %64, %cst_41 [1] : vector<16x42xf32> to vector<16xf32>
    %66 = vector.shape_cast %65 : vector<16xf32> to vector<16x1xf32>
    %cst_42 = arith.constant 0.154303357 : f32
    %67 = vector.broadcast %cst_42 : f32 to vector<16x1xf32>
    %68 = arith.mulf %66, %67 : vector<16x1xf32>
    %69 = arith.maximumf %48, %53 : vector<16x1xf32>
    %70 = arith.maximumf %69, %58 : vector<16x1xf32>
    %71 = arith.maximumf %70, %63 : vector<16x1xf32>
    %72 = arith.maximumf %71, %68 : vector<16x1xf32>
    %73 = arith.subf %48, %72 : vector<16x1xf32>
    %74 = math.exp %73 : vector<16x1xf32>
    %75 = arith.subf %53, %72 : vector<16x1xf32>
    %76 = math.exp %75 : vector<16x1xf32>
    %77 = arith.subf %58, %72 : vector<16x1xf32>
    %78 = math.exp %77 : vector<16x1xf32>
    %79 = arith.subf %63, %72 : vector<16x1xf32>
    %80 = math.exp %79 : vector<16x1xf32>
    %81 = arith.subf %68, %72 : vector<16x1xf32>
    %82 = math.exp %81 : vector<16x1xf32>
    %83 = arith.addf %74, %76 : vector<16x1xf32>
    %84 = arith.addf %83, %78 : vector<16x1xf32>
    %85 = arith.addf %84, %80 : vector<16x1xf32>
    %86 = arith.addf %85, %82 : vector<16x1xf32>
    %87 = tpu.reciprocal %86 {approx = true} : vector<16x1xf32> -> vector<16x1xf32>
    %88 = arith.mulf %74, %87 : vector<16x1xf32>
    %89 = arith.mulf %76, %87 : vector<16x1xf32>
    %90 = arith.mulf %78, %87 : vector<16x1xf32>
    %91 = arith.mulf %80, %87 : vector<16x1xf32>
    %92 = arith.mulf %82, %87 : vector<16x1xf32>
    %93 = vector.extract_strided_slice %25 {offsets = [16, 0], sizes = [16, 42], strides = [1, 1]} : vector<80x42xf32> to vector<16x42xf32>
    %94 = arith.addf %93, %7 : vector<16x42xf32>
    %95 = arith.mulf %94, %33 : vector<16x42xf32>
    %cst_43 = arith.constant dense<0.000000e+00> : vector<16xf32>
    %96 = vector.multi_reduction <add>, %95, %cst_43 [1] : vector<16x42xf32> to vector<16xf32>
    %97 = vector.shape_cast %96 : vector<16xf32> to vector<16x1xf32>
    %cst_44 = arith.constant 0.154303357 : f32
    %98 = vector.broadcast %cst_44 : f32 to vector<16x1xf32>
    %99 = arith.mulf %97, %98 : vector<16x1xf32>
    %100 = arith.mulf %94, %35 : vector<16x42xf32>
    %cst_45 = arith.constant dense<0.000000e+00> : vector<16xf32>
    %101 = vector.multi_reduction <add>, %100, %cst_45 [1] : vector<16x42xf32> to vector<16xf32>
    %102 = vector.shape_cast %101 : vector<16xf32> to vector<16x1xf32>
    %cst_46 = arith.constant 0.154303357 : f32
    %103 = vector.broadcast %cst_46 : f32 to vector<16x1xf32>
    %104 = arith.mulf %102, %103 : vector<16x1xf32>
    %105 = arith.mulf %94, %37 : vector<16x42xf32>
    %cst_47 = arith.constant dense<0.000000e+00> : vector<16xf32>
    %106 = vector.multi_reduction <add>, %105, %cst_47 [1] : vector<16x42xf32> to vector<16xf32>
    %107 = vector.shape_cast %106 : vector<16xf32> to vector<16x1xf32>
    %cst_48 = arith.constant 0.154303357 : f32
    %108 = vector.broadcast %cst_48 : f32 to vector<16x1xf32>
    %109 = arith.mulf %107, %108 : vector<16x1xf32>
    %110 = arith.mulf %94, %39 : vector<16x42xf32>
    %cst_49 = arith.constant dense<0.000000e+00> : vector<16xf32>
    %111 = vector.multi_reduction <add>, %110, %cst_49 [1] : vector<16x42xf32> to vector<16xf32>
    %112 = vector.shape_cast %111 : vector<16xf32> to vector<16x1xf32>
    %cst_50 = arith.constant 0.154303357 : f32
    %113 = vector.broadcast %cst_50 : f32 to vector<16x1xf32>
    %114 = arith.mulf %112, %113 : vector<16x1xf32>
    %115 = arith.mulf %94, %41 : vector<16x42xf32>
    %cst_51 = arith.constant dense<0.000000e+00> : vector<16xf32>
    %116 = vector.multi_reduction <add>, %115, %cst_51 [1] : vector<16x42xf32> to vector<16xf32>
    %117 = vector.shape_cast %116 : vector<16xf32> to vector<16x1xf32>
    %cst_52 = arith.constant 0.154303357 : f32
    %118 = vector.broadcast %cst_52 : f32 to vector<16x1xf32>
    %119 = arith.mulf %117, %118 : vector<16x1xf32>
    %120 = arith.maximumf %99, %104 : vector<16x1xf32>
    %121 = arith.maximumf %120, %109 : vector<16x1xf32>
    %122 = arith.maximumf %121, %114 : vector<16x1xf32>
    %123 = arith.maximumf %122, %119 : vector<16x1xf32>
    %124 = arith.subf %99, %123 : vector<16x1xf32>
    %125 = math.exp %124 : vector<16x1xf32>
    %126 = arith.subf %104, %123 : vector<16x1xf32>
    %127 = math.exp %126 : vector<16x1xf32>
    %128 = arith.subf %109, %123 : vector<16x1xf32>
    %129 = math.exp %128 : vector<16x1xf32>
    %130 = arith.subf %114, %123 : vector<16x1xf32>
    %131 = math.exp %130 : vector<16x1xf32>
    %132 = arith.subf %119, %123 : vector<16x1xf32>
    %133 = math.exp %132 : vector<16x1xf32>
    %134 = arith.addf %125, %127 : vector<16x1xf32>
    %135 = arith.addf %134, %129 : vector<16x1xf32>
    %136 = arith.addf %135, %131 : vector<16x1xf32>
    %137 = arith.addf %136, %133 : vector<16x1xf32>
    %138 = tpu.reciprocal %137 {approx = true} : vector<16x1xf32> -> vector<16x1xf32>
    %139 = arith.mulf %125, %138 : vector<16x1xf32>
    %140 = arith.mulf %127, %138 : vector<16x1xf32>
    %141 = arith.mulf %129, %138 : vector<16x1xf32>
    %142 = arith.mulf %131, %138 : vector<16x1xf32>
    %143 = arith.mulf %133, %138 : vector<16x1xf32>
    %144 = vector.extract_strided_slice %25 {offsets = [32, 0], sizes = [16, 42], strides = [1, 1]} : vector<80x42xf32> to vector<16x42xf32>
    %145 = arith.addf %144, %7 : vector<16x42xf32>
    %146 = arith.mulf %145, %33 : vector<16x42xf32>
    %cst_53 = arith.constant dense<0.000000e+00> : vector<16xf32>
    %147 = vector.multi_reduction <add>, %146, %cst_53 [1] : vector<16x42xf32> to vector<16xf32>
    %148 = vector.shape_cast %147 : vector<16xf32> to vector<16x1xf32>
    %cst_54 = arith.constant 0.154303357 : f32
    %149 = vector.broadcast %cst_54 : f32 to vector<16x1xf32>
    %150 = arith.mulf %148, %149 : vector<16x1xf32>
    %151 = arith.mulf %145, %35 : vector<16x42xf32>
    %cst_55 = arith.constant dense<0.000000e+00> : vector<16xf32>
    %152 = vector.multi_reduction <add>, %151, %cst_55 [1] : vector<16x42xf32> to vector<16xf32>
    %153 = vector.shape_cast %152 : vector<16xf32> to vector<16x1xf32>
    %cst_56 = arith.constant 0.154303357 : f32
    %154 = vector.broadcast %cst_56 : f32 to vector<16x1xf32>
    %155 = arith.mulf %153, %154 : vector<16x1xf32>
    %156 = arith.mulf %145, %37 : vector<16x42xf32>
    %cst_57 = arith.constant dense<0.000000e+00> : vector<16xf32>
    %157 = vector.multi_reduction <add>, %156, %cst_57 [1] : vector<16x42xf32> to vector<16xf32>
    %158 = vector.shape_cast %157 : vector<16xf32> to vector<16x1xf32>
    %cst_58 = arith.constant 0.154303357 : f32
    %159 = vector.broadcast %cst_58 : f32 to vector<16x1xf32>
    %160 = arith.mulf %158, %159 : vector<16x1xf32>
    %161 = arith.mulf %145, %39 : vector<16x42xf32>
    %cst_59 = arith.constant dense<0.000000e+00> : vector<16xf32>
    %162 = vector.multi_reduction <add>, %161, %cst_59 [1] : vector<16x42xf32> to vector<16xf32>
    %163 = vector.shape_cast %162 : vector<16xf32> to vector<16x1xf32>
    %cst_60 = arith.constant 0.154303357 : f32
    %164 = vector.broadcast %cst_60 : f32 to vector<16x1xf32>
    %165 = arith.mulf %163, %164 : vector<16x1xf32>
    %166 = arith.mulf %145, %41 : vector<16x42xf32>
    %cst_61 = arith.constant dense<0.000000e+00> : vector<16xf32>
    %167 = vector.multi_reduction <add>, %166, %cst_61 [1] : vector<16x42xf32> to vector<16xf32>
    %168 = vector.shape_cast %167 : vector<16xf32> to vector<16x1xf32>
    %cst_62 = arith.constant 0.154303357 : f32
    %169 = vector.broadcast %cst_62 : f32 to vector<16x1xf32>
    %170 = arith.mulf %168, %169 : vector<16x1xf32>
    %171 = arith.maximumf %150, %155 : vector<16x1xf32>
    %172 = arith.maximumf %171, %160 : vector<16x1xf32>
    %173 = arith.maximumf %172, %165 : vector<16x1xf32>
    %174 = arith.maximumf %173, %170 : vector<16x1xf32>
    %175 = arith.subf %150, %174 : vector<16x1xf32>
    %176 = math.exp %175 : vector<16x1xf32>
    %177 = arith.subf %155, %174 : vector<16x1xf32>
    %178 = math.exp %177 : vector<16x1xf32>
    %179 = arith.subf %160, %174 : vector<16x1xf32>
    %180 = math.exp %179 : vector<16x1xf32>
    %181 = arith.subf %165, %174 : vector<16x1xf32>
    %182 = math.exp %181 : vector<16x1xf32>
    %183 = arith.subf %170, %174 : vector<16x1xf32>
    %184 = math.exp %183 : vector<16x1xf32>
    %185 = arith.addf %176, %178 : vector<16x1xf32>
    %186 = arith.addf %185, %180 : vector<16x1xf32>
    %187 = arith.addf %186, %182 : vector<16x1xf32>
    %188 = arith.addf %187, %184 : vector<16x1xf32>
    %189 = tpu.reciprocal %188 {approx = true} : vector<16x1xf32> -> vector<16x1xf32>
    %190 = arith.mulf %176, %189 : vector<16x1xf32>
    %191 = arith.mulf %178, %189 : vector<16x1xf32>
    %192 = arith.mulf %180, %189 : vector<16x1xf32>
    %193 = arith.mulf %182, %189 : vector<16x1xf32>
    %194 = arith.mulf %184, %189 : vector<16x1xf32>
    %195 = vector.extract_strided_slice %25 {offsets = [48, 0], sizes = [16, 42], strides = [1, 1]} : vector<80x42xf32> to vector<16x42xf32>
    %196 = arith.addf %195, %7 : vector<16x42xf32>
    %197 = arith.mulf %196, %33 : vector<16x42xf32>
    %cst_63 = arith.constant dense<0.000000e+00> : vector<16xf32>
    %198 = vector.multi_reduction <add>, %197, %cst_63 [1] : vector<16x42xf32> to vector<16xf32>
    %199 = vector.shape_cast %198 : vector<16xf32> to vector<16x1xf32>
    %cst_64 = arith.constant 0.154303357 : f32
    %200 = vector.broadcast %cst_64 : f32 to vector<16x1xf32>
    %201 = arith.mulf %199, %200 : vector<16x1xf32>
    %202 = arith.mulf %196, %35 : vector<16x42xf32>
    %cst_65 = arith.constant dense<0.000000e+00> : vector<16xf32>
    %203 = vector.multi_reduction <add>, %202, %cst_65 [1] : vector<16x42xf32> to vector<16xf32>
    %204 = vector.shape_cast %203 : vector<16xf32> to vector<16x1xf32>
    %cst_66 = arith.constant 0.154303357 : f32
    %205 = vector.broadcast %cst_66 : f32 to vector<16x1xf32>
    %206 = arith.mulf %204, %205 : vector<16x1xf32>
    %207 = arith.mulf %196, %37 : vector<16x42xf32>
    %cst_67 = arith.constant dense<0.000000e+00> : vector<16xf32>
    %208 = vector.multi_reduction <add>, %207, %cst_67 [1] : vector<16x42xf32> to vector<16xf32>
    %209 = vector.shape_cast %208 : vector<16xf32> to vector<16x1xf32>
    %cst_68 = arith.constant 0.154303357 : f32
    %210 = vector.broadcast %cst_68 : f32 to vector<16x1xf32>
    %211 = arith.mulf %209, %210 : vector<16x1xf32>
    %212 = arith.mulf %196, %39 : vector<16x42xf32>
    %cst_69 = arith.constant dense<0.000000e+00> : vector<16xf32>
    %213 = vector.multi_reduction <add>, %212, %cst_69 [1] : vector<16x42xf32> to vector<16xf32>
    %214 = vector.shape_cast %213 : vector<16xf32> to vector<16x1xf32>
    %cst_70 = arith.constant 0.154303357 : f32
    %215 = vector.broadcast %cst_70 : f32 to vector<16x1xf32>
    %216 = arith.mulf %214, %215 : vector<16x1xf32>
    %217 = arith.mulf %196, %41 : vector<16x42xf32>
    %cst_71 = arith.constant dense<0.000000e+00> : vector<16xf32>
    %218 = vector.multi_reduction <add>, %217, %cst_71 [1] : vector<16x42xf32> to vector<16xf32>
    %219 = vector.shape_cast %218 : vector<16xf32> to vector<16x1xf32>
    %cst_72 = arith.constant 0.154303357 : f32
    %220 = vector.broadcast %cst_72 : f32 to vector<16x1xf32>
    %221 = arith.mulf %219, %220 : vector<16x1xf32>
    %222 = arith.maximumf %201, %206 : vector<16x1xf32>
    %223 = arith.maximumf %222, %211 : vector<16x1xf32>
    %224 = arith.maximumf %223, %216 : vector<16x1xf32>
    %225 = arith.maximumf %224, %221 : vector<16x1xf32>
    %226 = arith.subf %201, %225 : vector<16x1xf32>
    %227 = math.exp %226 : vector<16x1xf32>
    %228 = arith.subf %206, %225 : vector<16x1xf32>
    %229 = math.exp %228 : vector<16x1xf32>
    %230 = arith.subf %211, %225 : vector<16x1xf32>
    %231 = math.exp %230 : vector<16x1xf32>
    %232 = arith.subf %216, %225 : vector<16x1xf32>
    %233 = math.exp %232 : vector<16x1xf32>
    %234 = arith.subf %221, %225 : vector<16x1xf32>
    %235 = math.exp %234 : vector<16x1xf32>
    %236 = arith.addf %227, %229 : vector<16x1xf32>
    %237 = arith.addf %236, %231 : vector<16x1xf32>
    %238 = arith.addf %237, %233 : vector<16x1xf32>
    %239 = arith.addf %238, %235 : vector<16x1xf32>
    %240 = tpu.reciprocal %239 {approx = true} : vector<16x1xf32> -> vector<16x1xf32>
    %241 = arith.mulf %227, %240 : vector<16x1xf32>
    %242 = arith.mulf %229, %240 : vector<16x1xf32>
    %243 = arith.mulf %231, %240 : vector<16x1xf32>
    %244 = arith.mulf %233, %240 : vector<16x1xf32>
    %245 = arith.mulf %235, %240 : vector<16x1xf32>
    %246 = vector.extract_strided_slice %25 {offsets = [64, 0], sizes = [16, 42], strides = [1, 1]} : vector<80x42xf32> to vector<16x42xf32>
    %247 = arith.addf %246, %7 : vector<16x42xf32>
    %248 = arith.mulf %247, %33 : vector<16x42xf32>
    %cst_73 = arith.constant dense<0.000000e+00> : vector<16xf32>
    %249 = vector.multi_reduction <add>, %248, %cst_73 [1] : vector<16x42xf32> to vector<16xf32>
    %250 = vector.shape_cast %249 : vector<16xf32> to vector<16x1xf32>
    %cst_74 = arith.constant 0.154303357 : f32
    %251 = vector.broadcast %cst_74 : f32 to vector<16x1xf32>
    %252 = arith.mulf %250, %251 : vector<16x1xf32>
    %253 = arith.mulf %247, %35 : vector<16x42xf32>
    %cst_75 = arith.constant dense<0.000000e+00> : vector<16xf32>
    %254 = vector.multi_reduction <add>, %253, %cst_75 [1] : vector<16x42xf32> to vector<16xf32>
    %255 = vector.shape_cast %254 : vector<16xf32> to vector<16x1xf32>
    %cst_76 = arith.constant 0.154303357 : f32
    %256 = vector.broadcast %cst_76 : f32 to vector<16x1xf32>
    %257 = arith.mulf %255, %256 : vector<16x1xf32>
    %258 = arith.mulf %247, %37 : vector<16x42xf32>
    %cst_77 = arith.constant dense<0.000000e+00> : vector<16xf32>
    %259 = vector.multi_reduction <add>, %258, %cst_77 [1] : vector<16x42xf32> to vector<16xf32>
    %260 = vector.shape_cast %259 : vector<16xf32> to vector<16x1xf32>
    %cst_78 = arith.constant 0.154303357 : f32
    %261 = vector.broadcast %cst_78 : f32 to vector<16x1xf32>
    %262 = arith.mulf %260, %261 : vector<16x1xf32>
    %263 = arith.mulf %247, %39 : vector<16x42xf32>
    %cst_79 = arith.constant dense<0.000000e+00> : vector<16xf32>
    %264 = vector.multi_reduction <add>, %263, %cst_79 [1] : vector<16x42xf32> to vector<16xf32>
    %265 = vector.shape_cast %264 : vector<16xf32> to vector<16x1xf32>
    %cst_80 = arith.constant 0.154303357 : f32
    %266 = vector.broadcast %cst_80 : f32 to vector<16x1xf32>
    %267 = arith.mulf %265, %266 : vector<16x1xf32>
    %268 = arith.mulf %247, %41 : vector<16x42xf32>
    %cst_81 = arith.constant dense<0.000000e+00> : vector<16xf32>
    %269 = vector.multi_reduction <add>, %268, %cst_81 [1] : vector<16x42xf32> to vector<16xf32>
    %270 = vector.shape_cast %269 : vector<16xf32> to vector<16x1xf32>
    %cst_82 = arith.constant 0.154303357 : f32
    %271 = vector.broadcast %cst_82 : f32 to vector<16x1xf32>
    %272 = arith.mulf %270, %271 : vector<16x1xf32>
    %273 = arith.maximumf %252, %257 : vector<16x1xf32>
    %274 = arith.maximumf %273, %262 : vector<16x1xf32>
    %275 = arith.maximumf %274, %267 : vector<16x1xf32>
    %276 = arith.maximumf %275, %272 : vector<16x1xf32>
    %277 = arith.subf %252, %276 : vector<16x1xf32>
    %278 = math.exp %277 : vector<16x1xf32>
    %279 = arith.subf %257, %276 : vector<16x1xf32>
    %280 = math.exp %279 : vector<16x1xf32>
    %281 = arith.subf %262, %276 : vector<16x1xf32>
    %282 = math.exp %281 : vector<16x1xf32>
    %283 = arith.subf %267, %276 : vector<16x1xf32>
    %284 = math.exp %283 : vector<16x1xf32>
    %285 = arith.subf %272, %276 : vector<16x1xf32>
    %286 = math.exp %285 : vector<16x1xf32>
    %287 = arith.addf %278, %280 : vector<16x1xf32>
    %288 = arith.addf %287, %282 : vector<16x1xf32>
    %289 = arith.addf %288, %284 : vector<16x1xf32>
    %290 = arith.addf %289, %286 : vector<16x1xf32>
    %291 = tpu.reciprocal %290 {approx = true} : vector<16x1xf32> -> vector<16x1xf32>
    %292 = arith.mulf %278, %291 : vector<16x1xf32>
    %293 = arith.mulf %280, %291 : vector<16x1xf32>
    %294 = arith.mulf %282, %291 : vector<16x1xf32>
    %295 = arith.mulf %284, %291 : vector<16x1xf32>
    %296 = arith.mulf %286, %291 : vector<16x1xf32>
    %297 = vector.extract_strided_slice %31 {offsets = [0, 0], sizes = [16, 42], strides = [1, 1]} : vector<80x42xf32> to vector<16x42xf32>
    %298 = arith.addf %297, %21 : vector<16x42xf32>
    %299 = vector.broadcast %88 : vector<16x1xf32> to vector<16x42xf32>
    %300 = arith.mulf %299, %298 : vector<16x42xf32>
    %301 = vector.broadcast %139 : vector<16x1xf32> to vector<16x42xf32>
    %302 = arith.mulf %301, %298 : vector<16x42xf32>
    %303 = vector.broadcast %190 : vector<16x1xf32> to vector<16x42xf32>
    %304 = arith.mulf %303, %298 : vector<16x42xf32>
    %305 = vector.broadcast %241 : vector<16x1xf32> to vector<16x42xf32>
    %306 = arith.mulf %305, %298 : vector<16x42xf32>
    %307 = vector.broadcast %292 : vector<16x1xf32> to vector<16x42xf32>
    %308 = arith.mulf %307, %298 : vector<16x42xf32>
    %309 = vector.extract_strided_slice %31 {offsets = [16, 0], sizes = [16, 42], strides = [1, 1]} : vector<80x42xf32> to vector<16x42xf32>
    %310 = arith.addf %309, %21 : vector<16x42xf32>
    %311 = vector.broadcast %89 : vector<16x1xf32> to vector<16x42xf32>
    %312 = arith.mulf %311, %310 : vector<16x42xf32>
    %313 = arith.addf %300, %312 : vector<16x42xf32>
    %314 = vector.broadcast %140 : vector<16x1xf32> to vector<16x42xf32>
    %315 = arith.mulf %314, %310 : vector<16x42xf32>
    %316 = arith.addf %302, %315 : vector<16x42xf32>
    %317 = vector.broadcast %191 : vector<16x1xf32> to vector<16x42xf32>
    %318 = arith.mulf %317, %310 : vector<16x42xf32>
    %319 = arith.addf %304, %318 : vector<16x42xf32>
    %320 = vector.broadcast %242 : vector<16x1xf32> to vector<16x42xf32>
    %321 = arith.mulf %320, %310 : vector<16x42xf32>
    %322 = arith.addf %306, %321 : vector<16x42xf32>
    %323 = vector.broadcast %293 : vector<16x1xf32> to vector<16x42xf32>
    %324 = arith.mulf %323, %310 : vector<16x42xf32>
    %325 = arith.addf %308, %324 : vector<16x42xf32>
    %326 = vector.extract_strided_slice %31 {offsets = [32, 0], sizes = [16, 42], strides = [1, 1]} : vector<80x42xf32> to vector<16x42xf32>
    %327 = arith.addf %326, %21 : vector<16x42xf32>
    %328 = vector.broadcast %90 : vector<16x1xf32> to vector<16x42xf32>
    %329 = arith.mulf %328, %327 : vector<16x42xf32>
    %330 = arith.addf %313, %329 : vector<16x42xf32>
    %331 = vector.broadcast %141 : vector<16x1xf32> to vector<16x42xf32>
    %332 = arith.mulf %331, %327 : vector<16x42xf32>
    %333 = arith.addf %316, %332 : vector<16x42xf32>
    %334 = vector.broadcast %192 : vector<16x1xf32> to vector<16x42xf32>
    %335 = arith.mulf %334, %327 : vector<16x42xf32>
    %336 = arith.addf %319, %335 : vector<16x42xf32>
    %337 = vector.broadcast %243 : vector<16x1xf32> to vector<16x42xf32>
    %338 = arith.mulf %337, %327 : vector<16x42xf32>
    %339 = arith.addf %322, %338 : vector<16x42xf32>
    %340 = vector.broadcast %294 : vector<16x1xf32> to vector<16x42xf32>
    %341 = arith.mulf %340, %327 : vector<16x42xf32>
    %342 = arith.addf %325, %341 : vector<16x42xf32>
    %343 = vector.extract_strided_slice %31 {offsets = [48, 0], sizes = [16, 42], strides = [1, 1]} : vector<80x42xf32> to vector<16x42xf32>
    %344 = arith.addf %343, %21 : vector<16x42xf32>
    %345 = vector.broadcast %91 : vector<16x1xf32> to vector<16x42xf32>
    %346 = arith.mulf %345, %344 : vector<16x42xf32>
    %347 = arith.addf %330, %346 : vector<16x42xf32>
    %348 = vector.broadcast %142 : vector<16x1xf32> to vector<16x42xf32>
    %349 = arith.mulf %348, %344 : vector<16x42xf32>
    %350 = arith.addf %333, %349 : vector<16x42xf32>
    %351 = vector.broadcast %193 : vector<16x1xf32> to vector<16x42xf32>
    %352 = arith.mulf %351, %344 : vector<16x42xf32>
    %353 = arith.addf %336, %352 : vector<16x42xf32>
    %354 = vector.broadcast %244 : vector<16x1xf32> to vector<16x42xf32>
    %355 = arith.mulf %354, %344 : vector<16x42xf32>
    %356 = arith.addf %339, %355 : vector<16x42xf32>
    %357 = vector.broadcast %295 : vector<16x1xf32> to vector<16x42xf32>
    %358 = arith.mulf %357, %344 : vector<16x42xf32>
    %359 = arith.addf %342, %358 : vector<16x42xf32>
    %360 = vector.extract_strided_slice %31 {offsets = [64, 0], sizes = [16, 42], strides = [1, 1]} : vector<80x42xf32> to vector<16x42xf32>
    %361 = arith.addf %360, %21 : vector<16x42xf32>
    %362 = vector.broadcast %92 : vector<16x1xf32> to vector<16x42xf32>
    %363 = arith.mulf %362, %361 : vector<16x42xf32>
    %364 = arith.addf %347, %363 : vector<16x42xf32>
    %365 = vector.broadcast %143 : vector<16x1xf32> to vector<16x42xf32>
    %366 = arith.mulf %365, %361 : vector<16x42xf32>
    %367 = arith.addf %350, %366 : vector<16x42xf32>
    %368 = vector.broadcast %194 : vector<16x1xf32> to vector<16x42xf32>
    %369 = arith.mulf %368, %361 : vector<16x42xf32>
    %370 = arith.addf %353, %369 : vector<16x42xf32>
    %371 = vector.broadcast %245 : vector<16x1xf32> to vector<16x42xf32>
    %372 = arith.mulf %371, %361 : vector<16x42xf32>
    %373 = arith.addf %356, %372 : vector<16x42xf32>
    %374 = vector.broadcast %296 : vector<16x1xf32> to vector<16x42xf32>
    %375 = arith.mulf %374, %361 : vector<16x42xf32>
    %376 = arith.addf %359, %375 : vector<16x42xf32>
    %cst_83 = arith.constant 0.000000e+00 : f32
    %377 = vector.broadcast %cst_83 : f32 to vector<16x86xf32>
    %378 = tpu.concatenate %364, %377 in 1 : vector<16x42xf32>, vector<16x86xf32> -> vector<16x128xf32>
    %379 = arith.truncf %378 : vector<16x128xf32> to vector<16x128xbf16>
    %c0_84 = arith.constant 0 : index
    %c0_85 = arith.constant 0 : index
    %380 = vector.load %arg15[%c0_84, %c0_85] : memref<16x640xbf16, #tpu.memory_space<vmem>>, vector<16x128xbf16>
    tpu.vector_store %arg15[%c0_84, %c0_85], %379 {strides = array<i32>} : memref<16x640xbf16, #tpu.memory_space<vmem>>, vector<16x128xbf16>,
    %381 = tpu.concatenate %367, %377 in 1 : vector<16x42xf32>, vector<16x86xf32> -> vector<16x128xf32>
    %382 = arith.truncf %381 : vector<16x128xf32> to vector<16x128xbf16>
    %c0_86 = arith.constant 0 : index
    %c128 = arith.constant 128 : index
    %383 = vector.load %arg15[%c0_86, %c128] : memref<16x640xbf16, #tpu.memory_space<vmem>>, vector<16x128xbf16>
    tpu.vector_store %arg15[%c0_86, %c128], %382 {strides = array<i32>} : memref<16x640xbf16, #tpu.memory_space<vmem>>, vector<16x128xbf16>,
    %384 = tpu.concatenate %370, %377 in 1 : vector<16x42xf32>, vector<16x86xf32> -> vector<16x128xf32>
    %385 = arith.truncf %384 : vector<16x128xf32> to vector<16x128xbf16>
    %c0_87 = arith.constant 0 : index
    %c256 = arith.constant 256 : index
    %386 = vector.load %arg15[%c0_87, %c256] : memref<16x640xbf16, #tpu.memory_space<vmem>>, vector<16x128xbf16>
    tpu.vector_store %arg15[%c0_87, %c256], %385 {strides = array<i32>} : memref<16x640xbf16, #tpu.memory_space<vmem>>, vector<16x128xbf16>,
    %387 = tpu.concatenate %373, %377 in 1 : vector<16x42xf32>, vector<16x86xf32> -> vector<16x128xf32>
    %388 = arith.truncf %387 : vector<16x128xf32> to vector<16x128xbf16>
    %c0_88 = arith.constant 0 : index
    %c384 = arith.constant 384 : index
    %389 = vector.load %arg15[%c0_88, %c384] : memref<16x640xbf16, #tpu.memory_space<vmem>>, vector<16x128xbf16>
    tpu.vector_store %arg15[%c0_88, %c384], %388 {strides = array<i32>} : memref<16x640xbf16, #tpu.memory_space<vmem>>, vector<16x128xbf16>,
    %390 = tpu.concatenate %376, %377 in 1 : vector<16x42xf32>, vector<16x86xf32> -> vector<16x128xf32>
    %391 = arith.truncf %390 : vector<16x128xf32> to vector<16x128xbf16>
    %c0_89 = arith.constant 0 : index
    %c512 = arith.constant 512 : index
    %392 = vector.load %arg15[%c0_89, %c512] : memref<16x640xbf16, #tpu.memory_space<vmem>>, vector<16x128xbf16>
    tpu.vector_store %arg15[%c0_89, %c512], %391 {strides = array<i32>} : memref<16x640xbf16, #tpu.memory_space<vmem>>, vector<16x128xbf16>,
    %c0_90 = arith.constant 0 : index
    %c0_91 = arith.constant 0 : index
    %393 = vector.load %arg15[%c0_90, %c0_91] : memref<16x640xbf16, #tpu.memory_space<vmem>>, vector<16x640xbf16>
    %c0_92 = arith.constant 0 : index
    %c0_93 = arith.constant 0 : index
    %394 = vector.load %arg6[%c0_92, %c0_93] : memref<640x256xbf16, #tpu.memory_space<vmem>>, vector<640x256xbf16>
    %cst_94 = arith.constant dense<0.000000e+00> : vector<16x256xf32>
    %395 = tpu.matmul %393, %394, %cst_94 {dimension_numbers = #tpu.dot_dimension_numbers<[1], [0], [0], [1], [0, 0, 1, 1], [], []>} : vector<16x640xbf16>, vector<640x256xbf16>, vector<16x256xf32> -> vector<16x256xf32>
    %c0_95 = arith.constant 0 : index
    %c0_96 = arith.constant 0 : index
    %396 = vector.load %arg7[%c0_95, %c0_96] : memref<1x256xf32, #tpu.memory_space<vmem>>, vector<1x256xf32>
    %397 = vector.broadcast %396 : vector<1x256xf32> to vector<16x256xf32>
    %398 = arith.addf %395, %397 : vector<16x256xf32>
    %cst_97 = arith.constant 0.000000e+00 : f32
    %399 = vector.broadcast %cst_97 : f32 to vector<16x256xf32>
    %400 = arith.maximumf %398, %399 : vector<16x256xf32>
    %401 = arith.truncf %400 : vector<16x256xf32> to vector<16x256xbf16>
    %c0_98 = arith.constant 0 : index
    %c0_99 = arith.constant 0 : index
    %402 = vector.load %arg8[%c0_98, %c0_99] : memref<256x128xbf16, #tpu.memory_space<vmem>>, vector<256x128xbf16>
    %cst_100 = arith.constant dense<0.000000e+00> : vector<16x128xf32>
    %403 = tpu.matmul %401, %402, %cst_100 {dimension_numbers = #tpu.dot_dimension_numbers<[1], [0], [0], [1], [0, 0, 1, 1], [], []>} : vector<16x256xbf16>, vector<256x128xbf16>, vector<16x128xf32> -> vector<16x128xf32>
    %c0_101 = arith.constant 0 : index
    %c0_102 = arith.constant 0 : index
    %404 = vector.load %arg9[%c0_101, %c0_102] : memref<1x128xf32, #tpu.memory_space<vmem>>, vector<1x128xf32>
    %405 = vector.broadcast %404 : vector<1x128xf32> to vector<16x128xf32>
    %406 = arith.addf %403, %405 : vector<16x128xf32>
    %cst_103 = arith.constant 0.000000e+00 : f32
    %407 = vector.broadcast %cst_103 : f32 to vector<16x128xf32>
    %408 = arith.maximumf %406, %407 : vector<16x128xf32>
    %409 = arith.truncf %408 : vector<16x128xf32> to vector<16x128xbf16>
    %c0_104 = arith.constant 0 : index
    %c0_105 = arith.constant 0 : index
    %410 = vector.load %arg10[%c0_104, %c0_105] : memref<128x64xbf16, #tpu.memory_space<vmem>>, vector<128x64xbf16>
    %cst_106 = arith.constant dense<0.000000e+00> : vector<16x64xf32>
    %411 = tpu.matmul %409, %410, %cst_106 {dimension_numbers = #tpu.dot_dimension_numbers<[1], [0], [0], [1], [0, 0, 1, 1], [], []>} : vector<16x128xbf16>, vector<128x64xbf16>, vector<16x64xf32> -> vector<16x64xf32>
    %c0_107 = arith.constant 0 : index
    %c0_108 = arith.constant 0 : index
    %412 = vector.load %arg11[%c0_107, %c0_108] : memref<1x64xf32, #tpu.memory_space<vmem>>, vector<1x64xf32>
    %413 = vector.broadcast %412 : vector<1x64xf32> to vector<16x64xf32>
    %414 = arith.addf %411, %413 : vector<16x64xf32>
    %cst_109 = arith.constant 0.000000e+00 : f32
    %415 = vector.broadcast %cst_109 : f32 to vector<16x64xf32>
    %416 = arith.maximumf %414, %415 : vector<16x64xf32>
    %c0_110 = arith.constant 0 : index
    %c0_111 = arith.constant 0 : index
    %417 = vector.load %arg12[%c0_110, %c0_111] : memref<1x64xf32, #tpu.memory_space<vmem>>, vector<1x64xf32>
    %418 = vector.broadcast %417 : vector<1x64xf32> to vector<16x64xf32>
    %419 = arith.mulf %416, %418 : vector<16x64xf32>
    %cst_112 = arith.constant dense<0.000000e+00> : vector<16xf32>
    %420 = vector.multi_reduction <add>, %419, %cst_112 [1] : vector<16x64xf32> to vector<16xf32>
    %421 = vector.shape_cast %420 : vector<16xf32> to vector<16x1xf32>
    %c0_113 = arith.constant 0 : index
    %c0_114 = arith.constant 0 : index
    %422 = vector.load %arg13[%c0_113, %c0_114] : memref<1x1xf32, #tpu.memory_space<vmem>>, vector<1x1xf32>
    %423 = vector.broadcast %422 : vector<1x1xf32> to vector<16x1xf32>
    %424 = arith.addf %421, %423 : vector<16x1xf32>
    %425 = arith.negf %424 : vector<16x1xf32>
    %426 = math.exp %425 : vector<16x1xf32>
    %cst_115 = arith.constant 1.000000e+00 : f32
    %427 = vector.broadcast %cst_115 : f32 to vector<16x1xf32>
    %428 = arith.addf %427, %426 : vector<16x1xf32>
    %429 = arith.divf %427, %428 : vector<16x1xf32>
    %c0_116 = arith.constant 0 : index
    %c0_117 = arith.constant 0 : index
    %430 = vector.load %arg14[%c0_116, %c0_117] : memref<16x1xf32, #tpu.memory_space<vmem>>, vector<16x1xf32>
    tpu.vector_store %arg14[%c0_116, %c0_117], %429 {strides = array<i32>} : memref<16x1xf32, #tpu.memory_space<vmem>>, vector<16x1xf32>,
    return
  }
  func.func @transform_0(%arg0: i32) -> (i32, i32) {
    %c0_i32 = arith.constant 0 : i32
    %c0_i32_0 = arith.constant 0 : i32
    return %arg0, %c0_i32 : i32, i32
  }
  func.func @transform_1(%arg0: i32) -> (i32, i32) {
    %c0_i32 = arith.constant 0 : i32
    %c0_i32_0 = arith.constant 0 : i32
    return %arg0, %c0_i32 : i32, i32
  }
  func.func @transform_2(%arg0: i32) -> (i32, i32, i32) {
    %c0_i32 = arith.constant 0 : i32
    %c0_i32_0 = arith.constant 0 : i32
    %c0_i32_1 = arith.constant 0 : i32
    %c0_i32_2 = arith.constant 0 : i32
    return %c0_i32, %c0_i32_0, %c0_i32_1 : i32, i32, i32
  }
  func.func @transform_3(%arg0: i32) -> (i32, i32, i32) {
    %c0_i32 = arith.constant 0 : i32
    %c0_i32_0 = arith.constant 0 : i32
    %c0_i32_1 = arith.constant 0 : i32
    %c0_i32_2 = arith.constant 0 : i32
    return %c0_i32, %c0_i32_0, %c0_i32_1 : i32, i32, i32
  }
  func.func @transform_4(%arg0: i32) -> (i32, i32, i32) {
    %c0_i32 = arith.constant 0 : i32
    %c0_i32_0 = arith.constant 0 : i32
    %c0_i32_1 = arith.constant 0 : i32
    %c0_i32_2 = arith.constant 0 : i32
    return %c0_i32, %c0_i32_0, %c0_i32_1 : i32, i32, i32
  }
  func.func @transform_5(%arg0: i32) -> (i32, i32) {
    %c0_i32 = arith.constant 0 : i32
    %c0_i32_0 = arith.constant 0 : i32
    %c0_i32_1 = arith.constant 0 : i32
    return %c0_i32, %c0_i32_0 : i32, i32
  }
  func.func @transform_6(%arg0: i32) -> (i32, i32) {
    %c0_i32 = arith.constant 0 : i32
    %c0_i32_0 = arith.constant 0 : i32
    %c0_i32_1 = arith.constant 0 : i32
    return %c0_i32, %c0_i32_0 : i32, i32
  }
  func.func @transform_7(%arg0: i32) -> (i32, i32) {
    %c0_i32 = arith.constant 0 : i32
    %c0_i32_0 = arith.constant 0 : i32
    %c0_i32_1 = arith.constant 0 : i32
    return %c0_i32, %c0_i32_0 : i32, i32
  }
  func.func @transform_8(%arg0: i32) -> (i32, i32) {
    %c0_i32 = arith.constant 0 : i32
    %c0_i32_0 = arith.constant 0 : i32
    %c0_i32_1 = arith.constant 0 : i32
    return %c0_i32, %c0_i32_0 : i32, i32
  }
  func.func @transform_9(%arg0: i32) -> (i32, i32) {
    %c0_i32 = arith.constant 0 : i32
    %c0_i32_0 = arith.constant 0 : i32
    %c0_i32_1 = arith.constant 0 : i32
    return %c0_i32, %c0_i32_0 : i32, i32
  }
  func.func @transform_10(%arg0: i32) -> (i32, i32) {
    %c0_i32 = arith.constant 0 : i32
    %c0_i32_0 = arith.constant 0 : i32
    %c0_i32_1 = arith.constant 0 : i32
    return %c0_i32, %c0_i32_0 : i32, i32
  }
  func.func @transform_11(%arg0: i32) -> (i32, i32) {
    %c0_i32 = arith.constant 0 : i32
    %c0_i32_0 = arith.constant 0 : i32
    %c0_i32_1 = arith.constant 0 : i32
    return %c0_i32, %c0_i32_0 : i32, i32
  }
  func.func @transform_12(%arg0: i32) -> (i32, i32) {
    %c0_i32 = arith.constant 0 : i32
    %c0_i32_0 = arith.constant 0 : i32
    %c0_i32_1 = arith.constant 0 : i32
    return %c0_i32, %c0_i32_0 : i32, i32
  }
  func.func @transform_13(%arg0: i32) -> (i32, i32) {
    %c0_i32 = arith.constant 0 : i32
    %c0_i32_0 = arith.constant 0 : i32
    return %arg0, %c0_i32 : i32, i32
  }
}

</mosaic_0001>

<llo_original>
// kernel: failure_predictor_forward.1
$region0: #{failure_predictor_forward.1}
  #allocation0 [shape = 'u32[]', space=smem, size = 0x4, offset = 0x4, fixed_abs, tag = 'smem constant byte address 0x4 - core index']
  #allocation1 [shape = 'u32[72,128]{1,0:T(1,128)}', space=vmem, size = 0x9000, scoped, tag = 'internal scratch']
  #allocation2 [shape = 'bf16[16,640]{1,0:T(8,128)(2,1)}', space=vmem, size = 0x5000, scoped, tag = 'scratch operand']
  #allocation3 [shape = 'f32[1,1]{1,0:T(1,128)S(1)}', space=vmem, size = 0x200, scoped, tag = 'scoped memory for failure_predictor_forward.1']
  %s0 = inlined_call_operand.vmem [shape: bf16[80,10], index: 0, kind: input, shape index: {}]
  %s1 = inlined_call_operand.vmem [shape: bf16[16,32], index: 1, kind: input, shape index: {}]
  %s2 = inlined_call_operand.vmem [shape: bf16[3,10,42], index: 2, kind: input, shape index: {}]
  %s3 = inlined_call_operand.vmem [shape: bf16[3,32,42], index: 3, kind: input, shape index: {}]
  %s4 = inlined_call_operand.vmem [shape: f32[3,1,42], index: 4, kind: input, shape index: {}]
  %s5 = inlined_call_operand.vmem [shape: bf16[640,256], index: 5, kind: input, shape index: {}]
  %s6 = inlined_call_operand.vmem [shape: f32[1,256], index: 6, kind: input, shape index: {}]
  %s7 = inlined_call_operand.vmem [shape: bf16[256,128], index: 7, kind: input, shape index: {}]
  %s8 = inlined_call_operand.vmem [shape: f32[1,128], index: 8, kind: input, shape index: {}]
  %s9 = inlined_call_operand.vmem [shape: bf16[128,64], index: 9, kind: input, shape index: {}]
  %s10 = inlined_call_operand.vmem [shape: f32[1,64], index: 10, kind: input, shape index: {}]
  %s11 = inlined_call_operand.vmem [shape: f32[1,64], index: 11, kind: input, shape index: {}]
  %s12 = inlined_call_operand.<no memory space> [shape: f32[1,1], index: 12, kind: input, shape index: {}]
  %s13 = inlined_call_operand.vmem [shape: f32[16,1], index: 13, kind: output, shape index: {}]
  %s14 = sld [smem:[#allocation0]]
  $region62: #{failure_predictor_forward.1} parent=0
    _
  %s16 = ssub.s32 1, %s14
  %s17 = scalar_select 0, %s16, %s14
  %v18 = vstv %s12
  %19 = vst [vmem:[#allocation3] sm:$0x1] %v18
  // Predicated region
  $region2: #{failure_predictor_forward.1} parent=0 // pred_check
    _
  $region3: #{failure_predictor_forward.1} parent=0 // pred_check_branch
    %21 = sbr.rel (0) target = $region5
  $region4: #{failure_predictor_forward.1} parent=0 // pred_region
    _
  $region5: #{failure_predictor_forward.1} parent=0 // pred_fallthru
    _
  // Predicated region
  $region6: #{failure_predictor_forward.1} parent=0 // pred_check
    _
  $region7: #{failure_predictor_forward.1} parent=0 // pred_check_branch
    %23 = sbr.rel (0) target = $region9
  $region8: #{failure_predictor_forward.1} parent=0 // pred_region
    _
  $region9: #{failure_predictor_forward.1} parent=0 // pred_fallthru
    _
  // Predicated region
  $region10: #{failure_predictor_forward.1} parent=0 // pred_check
    _
  $region11: #{failure_predictor_forward.1} parent=0 // pred_check_branch
    %25 = sbr.rel (0) target = $region13
  $region12: #{failure_predictor_forward.1} parent=0 // pred_region
    _
  $region13: #{failure_predictor_forward.1} parent=0 // pred_fallthru
    _
  // Predicated region
  $region14: #{failure_predictor_forward.1} parent=0 // pred_check
    _
  $region15: #{failure_predictor_forward.1} parent=0 // pred_check_branch
    %27 = sbr.rel (0) target = $region17
  $region16: #{failure_predictor_forward.1} parent=0 // pred_region
    _
  $region17: #{failure_predictor_forward.1} parent=0 // pred_fallthru
    _
  // Predicated region
  $region18: #{failure_predictor_forward.1} parent=0 // pred_check
    _
  $region19: #{failure_predictor_forward.1} parent=0 // pred_check_branch
    %29 = sbr.rel (0) target = $region21
  $region20: #{failure_predictor_forward.1} parent=0 // pred_region
    _
  $region21: #{failure_predictor_forward.1} parent=0 // pred_fallthru
    _
  // Predicated region
  $region22: #{failure_predictor_forward.1} parent=0 // pred_check
    _
  $region23: #{failure_predictor_forward.1} parent=0 // pred_check_branch
    %31 = sbr.rel (0) target = $region25
  $region24: #{failure_predictor_forward.1} parent=0 // pred_region
    _
  $region25: #{failure_predictor_forward.1} parent=0 // pred_fallthru
    _
  // Predicated region
  $region26: #{failure_predictor_forward.1} parent=0 // pred_check
    _
  $region27: #{failure_predictor_forward.1} parent=0 // pred_check_branch
    %33 = sbr.rel (0) target = $region29
  $region28: #{failure_predictor_forward.1} parent=0 // pred_region
    _
  $region29: #{failure_predictor_forward.1} parent=0 // pred_fallthru
    _
  // Predicated region
  $region30: #{failure_predictor_forward.1} parent=0 // pred_check
    _
  $region31: #{failure_predictor_forward.1} parent=0 // pred_check_branch
    %35 = sbr.rel (0) target = $region33
  $region32: #{failure_predictor_forward.1} parent=0 // pred_region
    _
  $region33: #{failure_predictor_forward.1} parent=0 // pred_fallthru
    _
  // Predicated region
  $region34: #{failure_predictor_forward.1} parent=0 // pred_check
    _
  $region35: #{failure_predictor_forward.1} parent=0 // pred_check_branch
    %37 = sbr.rel (0) target = $region37
  $region36: #{failure_predictor_forward.1} parent=0 // pred_region
    _
  $region37: #{failure_predictor_forward.1} parent=0 // pred_fallthru
    _
  // Predicated region
  $region38: #{failure_predictor_forward.1} parent=0 // pred_check
    _
  $region39: #{failure_predictor_forward.1} parent=0 // pred_check_branch
    %39 = sbr.rel (0) target = $region41
  $region40: #{failure_predictor_forward.1} parent=0 // pred_region
    _
  $region41: #{failure_predictor_forward.1} parent=0 // pred_fallthru
    _
  // Predicated region
  $region42: #{failure_predictor_forward.1} parent=0 // pred_check
    _
  $region43: #{failure_predictor_forward.1} parent=0 // pred_check_branch
    %41 = sbr.rel (0) target = $region45
  $region44: #{failure_predictor_forward.1} parent=0 // pred_region
    _
  $region45: #{failure_predictor_forward.1} parent=0 // pred_fallthru
    _
  // Predicated region
  $region46: #{failure_predictor_forward.1} parent=0 // pred_check
    _
  $region47: #{failure_predictor_forward.1} parent=0 // pred_check_branch
    %43 = sbr.rel (0) target = $region49
  $region48: #{failure_predictor_forward.1} parent=0 // pred_region
    _
  $region49: #{failure_predictor_forward.1} parent=0 // pred_fallthru
    _
  // Predicated region
  $region50: #{failure_predictor_forward.1} parent=0 // pred_check
    _
  $region51: #{failure_predictor_forward.1} parent=0 // pred_check_branch
    %45 = sbr.rel (0) target = $region53
  $region52: #{failure_predictor_forward.1} parent=0 // pred_region
    _
  $region53: #{failure_predictor_forward.1} parent=0 // pred_fallthru
    _
  %v47 = vld [vmem:[%s1] sm:$0xf]
  %v48 = vld [vmem:[%s1 + $0x4] sm:$0xf]
  %v49 = vld [vmem:[%s3] sm:$0xf]
  %v50 = vld [vmem:[%s3 + $0x4] sm:$0xf]
  %v51 = vld [vmem:[%s3 + $0x8] sm:$0xf]
  %v52 = vld [vmem:[%s3 + $0xc] sm:$0xf]
  %v53 = vld [vmem:[%s4] sm:$0x1]
  %v55 = vperm.slane %v53, 0
  %v59 = vunpack.c.l.b16 %v47
  %v60 = vunpack.c.l.b16 %v48
  %v61 = vpack.c.b16 %v60, %v59
  %v66 = vunpack.c.l.b16 %v49
  %v67 = vunpack.c.l.b16 %v50
  %v68 = vunpack.c.l.b16 %v51
  %v69 = vunpack.c.l.b16 %v52
  %v70 = vpack.c.b16 %v67, %v66
  %v71 = vpack.c.b16 %v69, %v68
  %vm74 = vcmask 261120
  %v76 = vsel %vm74, %v61, 0
  %78 = vmatpush.bf16.msra.mxu0 0
  %79 = vmatpush.bf16.msra.mxu0 0
  %80 = vmatpush.bf16.msra.mxu0 0
  %81 = vmatpush.bf16.msra.mxu0 0
  %82 = vmatpush.bf16.msra.mxu0 0
  %83 = vmatpush.bf16.msra.mxu0 0
  %84 = vmatpush.bf16.msra.mxu0 %v71
  %85 = vmatpush.bf16.msra.mxu0 %v70
  %86 = vmatmul.bf16.gmra.mxu0 %v76
  %v87 = vpop.f32.mrf.mxu0
  %v88 = vadd.f32 %v55, %v87
  %v89 = vpop.f32.mrf.mxu0
  %v90 = vadd.f32 %v55, %v89
  %91 = vdwg.mxu0
  %s92 = scalar_lea.vmem %s3, 16
  %v93 = vld [vmem:[%s92] sm:$0xf]
  %v94 = vld [vmem:[%s92 + $0x4] sm:$0xf]
  %v95 = vld [vmem:[%s92 + $0x8] sm:$0xf]
  %v96 = vld [vmem:[%s92 + $0xc] sm:$0xf]
  %s97 = scalar_lea.vmem %s4, 1
  %v98 = vld [vmem:[%s97] sm:$0x1]
  %v100 = vperm.slane %v98, 0
  %v106 = vunpack.c.l.b16 %v93
  %v107 = vunpack.c.l.b16 %v94
  %v108 = vunpack.c.l.b16 %v95
  %v109 = vunpack.c.l.b16 %v96
  %v110 = vpack.c.b16 %v107, %v106
  %v111 = vpack.c.b16 %v109, %v108
  %114 = vmatpush.bf16.msra.mxu0 0
  %115 = vmatpush.bf16.msra.mxu0 0
  %116 = vmatpush.bf16.msra.mxu0 0
  %117 = vmatpush.bf16.msra.mxu0 0
  %118 = vmatpush.bf16.msra.mxu0 0
  %119 = vmatpush.bf16.msra.mxu0 0
  %120 = vmatpush.bf16.msra.mxu0 %v111
  %121 = vmatpush.bf16.msra.mxu0 %v110
  %122 = vmatmul.bf16.gmra.mxu0 %v76
  %v123 = vpop.f32.mrf.mxu0
  %v124 = vadd.f32 %v100, %v123
  %v125 = vpop.f32.mrf.mxu0
  %v126 = vadd.f32 %v100, %v125
  %127 = vdwg.mxu0
  %s128 = scalar_lea.vmem %s3, 32
  %v129 = vld [vmem:[%s128] sm:$0xf]
  %v130 = vld [vmem:[%s128 + $0x4] sm:$0xf]
  %v131 = vld [vmem:[%s128 + $0x8] sm:$0xf]
  %v132 = vld [vmem:[%s128 + $0xc] sm:$0xf]
  %s133 = scalar_lea.vmem %s4, 2
  %v134 = vld [vmem:[%s133] sm:$0x1]
  %v136 = vperm.slane %v134, 0
  %v142 = vunpack.c.l.b16 %v129
  %v143 = vunpack.c.l.b16 %v130
  %v144 = vunpack.c.l.b16 %v131
  %v145 = vunpack.c.l.b16 %v132
  %v146 = vpack.c.b16 %v143, %v142
  %v147 = vpack.c.b16 %v145, %v144
  %150 = vmatpush.bf16.msra.mxu0 0
  %151 = vmatpush.bf16.msra.mxu0 0
  %152 = vmatpush.bf16.msra.mxu0 0
  %153 = vmatpush.bf16.msra.mxu0 0
  %154 = vmatpush.bf16.msra.mxu0 0
  %155 = vmatpush.bf16.msra.mxu0 0
  %156 = vmatpush.bf16.msra.mxu0 %v147
  %157 = vmatpush.bf16.msra.mxu0 %v146
  %158 = vmatmul.bf16.gmra.mxu0 %v76
  %v159 = vpop.f32.mrf.mxu0
  %v160 = vadd.f32 %v136, %v159
  %v161 = vpop.f32.mrf.mxu0
  %v162 = vadd.f32 %v136, %v161
  %163 = vdwg.mxu0
  %v164 = vld [vmem:[%s0] sm:$0xf]
  %v165 = vld [vmem:[%s0 + $0x4] sm:$0xf]
  %v166 = vld [vmem:[%s0 + $0x8] sm:$0xf]
  %v167 = vld [vmem:[%s0 + $0xc] sm:$0xf]
  %v168 = vld [vmem:[%s0 + $0x10] sm:$0xf]
  %v169 = vld [vmem:[%s0 + $0x14] sm:$0xf]
  %v170 = vld [vmem:[%s0 + $0x18] sm:$0xf]
  %v171 = vld [vmem:[%s0 + $0x1c] sm:$0xf]
  %v172 = vld [vmem:[%s0 + $0x20] sm:$0xf]
  %v173 = vld [vmem:[%s0 + $0x24] sm:$0xf]
  %v174 = vld [vmem:[%s2] sm:$0xf]
  %v175 = vld [vmem:[%s2 + $0x4] sm:$0x1]
  %v186 = vunpack.c.l.b16 %v164
  %v187 = vunpack.c.l.b16 %v165
  %v188 = vunpack.c.l.b16 %v166
  %v189 = vunpack.c.l.b16 %v167
  %v190 = vunpack.c.l.b16 %v168
  %v191 = vunpack.c.l.b16 %v169
  %v192 = vunpack.c.l.b16 %v170
  %v193 = vunpack.c.l.b16 %v171
  %v194 = vunpack.c.l.b16 %v172
  %v195 = vunpack.c.l.b16 %v173
  %v196 = vpack.c.b16 %v187, %v186
  %v197 = vpack.c.b16 %v189, %v188
  %v198 = vpack.c.b16 %v191, %v190
  %v199 = vpack.c.b16 %v193, %v192
  %v200 = vpack.c.b16 %v195, %v194
  %v203 = vunpack.c.l.b16 %v174
  %v204 = vunpack.c.l.b16 %v175
  %v205 = vpack.c.b16 %v204, %v203
  %vm206 = vcmask 80896
  %v208 = vsel %vm206, %v196, 0
  %v211 = vsel %vm206, %v197, 0
  %v214 = vsel %vm206, %v198, 0
  %v217 = vsel %vm206, %v199, 0
  %v220 = vsel %vm206, %v200, 0
  %vm222 = vcmask 1044480
  %v224 = vsel %vm222, %v205, 0
  %226 = vmatpush.bf16.msra.mxu0 0
  %227 = vmatpush.bf16.msra.mxu0 0
  %228 = vmatpush.bf16.msra.mxu0 0
  %229 = vmatpush.bf16.msra.mxu0 0
  %230 = vmatpush.bf16.msra.mxu0 0
  %231 = vmatpush.bf16.msra.mxu0 0
  %232 = vmatpush.bf16.msra.mxu0 0
  %233 = vmatpush.bf16.msra.mxu0 %v224
  %234 = vmatmul.bf16.gmra.mxu0 %v208
  %v235 = vpop.f32.mrf.mxu0
  %v236 = vadd.f32 0.0, %v235
  %v237 = vpop.f32.mrf.mxu0
  %v238 = vadd.f32 0.0, %v237
  %239 = vmatmul.bf16.gmra.mxu0 %v211
  %v240 = vpop.f32.mrf.mxu0
  %v241 = vadd.f32 0.0, %v240
  %v242 = vpop.f32.mrf.mxu0
  %v243 = vadd.f32 0.0, %v242
  %244 = vmatmul.bf16.gmra.mxu0 %v214
  %v245 = vpop.f32.mrf.mxu0
  %v246 = vadd.f32 0.0, %v245
  %v247 = vpop.f32.mrf.mxu0
  %v248 = vadd.f32 0.0, %v247
  %249 = vmatmul.bf16.gmra.mxu0 %v217
  %v250 = vpop.f32.mrf.mxu0
  %v251 = vadd.f32 0.0, %v250
  %v252 = vpop.f32.mrf.mxu0
  %v253 = vadd.f32 0.0, %v252
  %254 = vmatmul.bf16.gmra.mxu0 %v220
  %v255 = vpop.f32.mrf.mxu0
  %v256 = vadd.f32 0.0, %v255
  %v257 = vpop.f32.mrf.mxu0
  %v258 = vadd.f32 0.0, %v257
  %259 = vdwg.mxu0
  %s260 = scalar_lea.vmem %s2, 8
  %v261 = vld [vmem:[%s260] sm:$0xf]
  %v262 = vld [vmem:[%s260 + $0x4] sm:$0x1]
  %v265 = vunpack.c.l.b16 %v261
  %v266 = vunpack.c.l.b16 %v262
  %v267 = vpack.c.b16 %v266, %v265
  %v269 = vsel %vm222, %v267, 0
  %271 = vmatpush.bf16.msra.mxu0 0
  %272 = vmatpush.bf16.msra.mxu0 0
  %273 = vmatpush.bf16.msra.mxu0 0
  %274 = vmatpush.bf16.msra.mxu0 0
  %275 = vmatpush.bf16.msra.mxu0 0
  %276 = vmatpush.bf16.msra.mxu0 0
  %277 = vmatpush.bf16.msra.mxu0 0
  %278 = vmatpush.bf16.msra.mxu0 %v269
  %279 = vmatmul.bf16.gmra.mxu0 %v208
  %v280 = vpop.f32.mrf.mxu0
  %v281 = vadd.f32 0.0, %v280
  %v282 = vpop.f32.mrf.mxu0
  %v283 = vadd.f32 0.0, %v282
  %284 = vmatmul.bf16.gmra.mxu0 %v211
  %v285 = vpop.f32.mrf.mxu0
  %v286 = vadd.f32 0.0, %v285
  %v287 = vpop.f32.mrf.mxu0
  %v288 = vadd.f32 0.0, %v287
  %289 = vmatmul.bf16.gmra.mxu0 %v214
  %v290 = vpop.f32.mrf.mxu0
  %v291 = vadd.f32 0.0, %v290
  %v292 = vpop.f32.mrf.mxu0
  %v293 = vadd.f32 0.0, %v292
  %294 = vmatmul.bf16.gmra.mxu0 %v217
  %v295 = vpop.f32.mrf.mxu0
  %v296 = vadd.f32 0.0, %v295
  %v297 = vpop.f32.mrf.mxu0
  %v298 = vadd.f32 0.0, %v297
  %299 = vmatmul.bf16.gmra.mxu0 %v220
  %v300 = vpop.f32.mrf.mxu0
  %v301 = vadd.f32 0.0, %v300
  %v302 = vpop.f32.mrf.mxu0
  %v303 = vadd.f32 0.0, %v302
  %304 = vdwg.mxu0
  %s305 = scalar_lea.vmem %s2, 16
  %v306 = vld [vmem:[%s305] sm:$0xf]
  %v307 = vld [vmem:[%s305 + $0x4] sm:$0x1]
  %v310 = vunpack.c.l.b16 %v306
  %v311 = vunpack.c.l.b16 %v307
  %v312 = vpack.c.b16 %v311, %v310
  %v314 = vsel %vm222, %v312, 0
  %316 = vmatpush.bf16.msra.mxu0 0
  %317 = vmatpush.bf16.msra.mxu0 0
  %318 = vmatpush.bf16.msra.mxu0 0
  %319 = vmatpush.bf16.msra.mxu0 0
  %320 = vmatpush.bf16.msra.mxu0 0
  %321 = vmatpush.bf16.msra.mxu0 0
  %322 = vmatpush.bf16.msra.mxu0 0
  %323 = vmatpush.bf16.msra.mxu0 %v314
  %324 = vmatmul.bf16.gmra.mxu0 %v208
  %v325 = vpop.f32.mrf.mxu0
  %v326 = vadd.f32 0.0, %v325
  %v327 = vpop.f32.mrf.mxu0
  %v328 = vadd.f32 0.0, %v327
  %329 = vmatmul.bf16.gmra.mxu0 %v211
  %v330 = vpop.f32.mrf.mxu0
  %v331 = vadd.f32 0.0, %v330
  %v332 = vpop.f32.mrf.mxu0
  %v333 = vadd.f32 0.0, %v332
  %334 = vmatmul.bf16.gmra.mxu0 %v214
  %v335 = vpop.f32.mrf.mxu0
  %v336 = vadd.f32 0.0, %v335
  %v337 = vpop.f32.mrf.mxu0
  %v338 = vadd.f32 0.0, %v337
  %339 = vmatmul.bf16.gmra.mxu0 %v217
  %v340 = vpop.f32.mrf.mxu0
  %v341 = vadd.f32 0.0, %v340
  %v342 = vpop.f32.mrf.mxu0
  %v343 = vadd.f32 0.0, %v342
  %344 = vmatmul.bf16.gmra.mxu0 %v220
  %v345 = vpop.f32.mrf.mxu0
  %v346 = vadd.f32 0.0, %v345
  %v347 = vpop.f32.mrf.mxu0
  %v348 = vadd.f32 0.0, %v347
  %349 = vdwg.mxu0
  %v350 = vadd.f32 %v281, %v124
  %v351 = vadd.f32 %v283, %v126
  %v352 = vadd.f32 %v286, %v124
  %v353 = vadd.f32 %v288, %v126
  %v354 = vadd.f32 %v291, %v124
  %v355 = vadd.f32 %v293, %v126
  %v356 = vadd.f32 %v296, %v124
  %v357 = vadd.f32 %v298, %v126
  %v358 = vadd.f32 %v301, %v124
  %v359 = vadd.f32 %v303, %v126
  %v360 = vadd.f32 %v236, %v88
  %v361 = vadd.f32 %v238, %v90
  %v362 = vmul.f32 %v360, %v350
  %v363 = vmul.f32 %v361, %v351
  %vm364 = vcmask 343040
  %v365 = vsel %vm364, %v362, 0.0
  %366 = vadd.xlane.f32.xlu0 %v365
  %v367 = vpop.xlane.xlu0 %366
  %v368 = vsel %vm364, %v363, 0.0
  %369 = vadd.xlane.f32.xlu0 %v368
  %v370 = vpop.xlane.xlu0 %369
  %v371 = vmul.f32 %v367, 0.15430336
  %v372 = vmul.f32 %v370, 0.15430336
  %v373 = vmul.f32 %v360, %v352
  %v374 = vmul.f32 %v361, %v353
  %v375 = vsel %vm364, %v373, 0.0
  %376 = vadd.xlane.f32.xlu0 %v375
  %v377 = vpop.xlane.xlu0 %376
  %v378 = vsel %vm364, %v374, 0.0
  %379 = vadd.xlane.f32.xlu0 %v378
  %v380 = vpop.xlane.xlu0 %379
  %v381 = vmul.f32 %v377, 0.15430336
  %v382 = vmul.f32 %v380, 0.15430336
  %v383 = vmul.f32 %v360, %v354
  %v384 = vmul.f32 %v361, %v355
  %v385 = vsel %vm364, %v383, 0.0
  %386 = vadd.xlane.f32.xlu0 %v385
  %v387 = vpop.xlane.xlu0 %386
  %v388 = vsel %vm364, %v384, 0.0
  %389 = vadd.xlane.f32.xlu0 %v388
  %v390 = vpop.xlane.xlu0 %389
  %v391 = vmul.f32 %v387, 0.15430336
  %v392 = vmul.f32 %v390, 0.15430336
  %v393 = vmul.f32 %v360, %v356
  %v394 = vmul.f32 %v361, %v357
  %v395 = vsel %vm364, %v393, 0.0
  %396 = vadd.xlane.f32.xlu0 %v395
  %v397 = vpop.xlane.xlu0 %396
  %v398 = vsel %vm364, %v394, 0.0
  %399 = vadd.xlane.f32.xlu0 %v398
  %v400 = vpop.xlane.xlu0 %399
  %v401 = vmul.f32 %v397, 0.15430336
  %v402 = vmul.f32 %v400, 0.15430336
  %v403 = vmul.f32 %v360, %v358
  %v404 = vmul.f32 %v361, %v359
  %v405 = vsel %vm364, %v403, 0.0
  %406 = vadd.xlane.f32.xlu0 %v405
  %v407 = vpop.xlane.xlu0 %406
  %v408 = vsel %vm364, %v404, 0.0
  %409 = vadd.xlane.f32.xlu0 %v408
  %v410 = vpop.xlane.xlu0 %409
  %v411 = vmul.f32 %v407, 0.15430336
  %v412 = vmul.f32 %v410, 0.15430336
  %v413 = vmax.f32 %v371, %v381
  %v414 = vmax.f32 %v372, %v382
  %v415 = vmax.f32 %v413, %v391
  %v416 = vmax.f32 %v414, %v392
  %v417 = vmax.f32 %v415, %v401
  %v418 = vmax.f32 %v416, %v402
  %v419 = vmax.f32 %v417, %v411
  %v420 = vmax.f32 %v418, %v412
  %v421 = vsub.f32 %v371, %v419
  %v422 = vsub.f32 %v372, %v420
  %v423 = vmul.f32 %v421, 1.442695
  %v424 = vpow.pop %v423
  %v425 = vmul.f32 %v422, 1.442695
  %v426 = vpow.pop %v425
  %v427 = vsub.f32 %v381, %v419
  %v428 = vsub.f32 %v382, %v420
  %v429 = vmul.f32 %v427, 1.442695
  %v430 = vpow.pop %v429
  %v431 = vmul.f32 %v428, 1.442695
  %v432 = vpow.pop %v431
  %v433 = vsub.f32 %v391, %v419
  %v434 = vsub.f32 %v392, %v420
  %v435 = vmul.f32 %v433, 1.442695
  %v436 = vpow.pop %v435
  %v437 = vmul.f32 %v434, 1.442695
  %v438 = vpow.pop %v437
  %v439 = vsub.f32 %v401, %v419
  %v440 = vsub.f32 %v402, %v420
  %v441 = vmul.f32 %v439, 1.442695
  %v442 = vpow.pop %v441
  %v443 = vmul.f32 %v440, 1.442695
  %v444 = vpow.pop %v443
  %v445 = vsub.f32 %v411, %v419
  %v446 = vsub.f32 %v412, %v420
  %v447 = vmul.f32 %v445, 1.442695
  %v448 = vpow.pop %v447
  %v449 = vmul.f32 %v446, 1.442695
  %v450 = vpow.pop %v449
  %v451 = vadd.f32 %v424, %v430
  %v452 = vadd.f32 %v426, %v432
  %v453 = vadd.f32 %v451, %v436
  %v454 = vadd.f32 %v452, %v438
  %v455 = vadd.f32 %v453, %v442
  %v456 = vadd.f32 %v454, %v444
  %v457 = vadd.f32 %v455, %v448
  %v458 = vadd.f32 %v456, %v450
  %v459 = vrcp.pop %v457
  %v460 = vrcp.pop %v458
  %v461 = vmul.f32 %v424, %v459
  %v462 = vmul.f32 %v426, %v460
  %v463 = vmul.f32 %v430, %v459
  %v464 = vmul.f32 %v432, %v460
  %v465 = vmul.f32 %v436, %v459
  %v466 = vmul.f32 %v438, %v460
  %v467 = vmul.f32 %v442, %v459
  %v468 = vmul.f32 %v444, %v460
  %v469 = vmul.f32 %v448, %v459
  %v470 = vmul.f32 %v450, %v460
  %v471 = vadd.f32 %v241, %v88
  %v472 = vadd.f32 %v243, %v90
  %v473 = vmul.f32 %v471, %v350
  %v474 = vmul.f32 %v472, %v351
  %v475 = vsel %vm364, %v473, 0.0
  %476 = vadd.xlane.f32.xlu0 %v475
  %v477 = vpop.xlane.xlu0 %476
  %v478 = vsel %vm364, %v474, 0.0
  %479 = vadd.xlane.f32.xlu0 %v478
  %v480 = vpop.xlane.xlu0 %479
  %v481 = vmul.f32 %v477, 0.15430336
  %v482 = vmul.f32 %v480, 0.15430336
  %v483 = vmul.f32 %v471, %v352
  %v484 = vmul.f32 %v472, %v353
  %v485 = vsel %vm364, %v483, 0.0
  %486 = vadd.xlane.f32.xlu0 %v485
  %v487 = vpop.xlane.xlu0 %486
  %v488 = vsel %vm364, %v484, 0.0
  %489 = vadd.xlane.f32.xlu0 %v488
  %v490 = vpop.xlane.xlu0 %489
  %v491 = vmul.f32 %v487, 0.15430336
  %v492 = vmul.f32 %v490, 0.15430336
  %v493 = vmul.f32 %v471, %v354
  %v494 = vmul.f32 %v472, %v355
  %v495 = vsel %vm364, %v493, 0.0
  %496 = vadd.xlane.f32.xlu0 %v495
  %v497 = vpop.xlane.xlu0 %496
  %v498 = vsel %vm364, %v494, 0.0
  %499 = vadd.xlane.f32.xlu0 %v498
  %v500 = vpop.xlane.xlu0 %499
  %v501 = vmul.f32 %v497, 0.15430336
  %v502 = vmul.f32 %v500, 0.15430336
  %v503 = vmul.f32 %v471, %v356
  %v504 = vmul.f32 %v472, %v357
  %v505 = vsel %vm364, %v503, 0.0
  %506 = vadd.xlane.f32.xlu0 %v505
  %v507 = vpop.xlane.xlu0 %506
  %v508 = vsel %vm364, %v504, 0.0
  %509 = vadd.xlane.f32.xlu0 %v508
  %v510 = vpop.xlane.xlu0 %509
  %v511 = vmul.f32 %v507, 0.15430336
  %v512 = vmul.f32 %v510, 0.15430336
  %v513 = vmul.f32 %v471, %v358
  %v514 = vmul.f32 %v472, %v359
  %v515 = vsel %vm364, %v513, 0.0
  %516 = vadd.xlane.f32.xlu0 %v515
  %v517 = vpop.xlane.xlu0 %516
  %v518 = vsel %vm364, %v514, 0.0
  %519 = vadd.xlane.f32.xlu0 %v518
  %v520 = vpop.xlane.xlu0 %519
  %v521 = vmul.f32 %v517, 0.15430336
  %v522 = vmul.f32 %v520, 0.15430336
  %v523 = vmax.f32 %v481, %v491
  %v524 = vmax.f32 %v482, %v492
  %v525 = vmax.f32 %v523, %v501
  %v526 = vmax.f32 %v524, %v502
  %v527 = vmax.f32 %v525, %v511
  %v528 = vmax.f32 %v526, %v512
  %v529 = vmax.f32 %v527, %v521
  %v530 = vmax.f32 %v528, %v522
  %v531 = vsub.f32 %v481, %v529
  %v532 = vsub.f32 %v482, %v530
  %v533 = vmul.f32 %v531, 1.442695
  %v534 = vpow.pop %v533
  %v535 = vmul.f32 %v532, 1.442695
  %v536 = vpow.pop %v535
  %v537 = vsub.f32 %v491, %v529
  %v538 = vsub.f32 %v492, %v530
  %v539 = vmul.f32 %v537, 1.442695
  %v540 = vpow.pop %v539
  %v541 = vmul.f32 %v538, 1.442695
  %v542 = vpow.pop %v541
  %v543 = vsub.f32 %v501, %v529
  %v544 = vsub.f32 %v502, %v530
  %v545 = vmul.f32 %v543, 1.442695
  %v546 = vpow.pop %v545
  %v547 = vmul.f32 %v544, 1.442695
  %v548 = vpow.pop %v547
  %v549 = vsub.f32 %v511, %v529
  %v550 = vsub.f32 %v512, %v530
  %v551 = vmul.f32 %v549, 1.442695
  %v552 = vpow.pop %v551
  %v553 = vmul.f32 %v550, 1.442695
  %v554 = vpow.pop %v553
  %v555 = vsub.f32 %v521, %v529
  %v556 = vsub.f32 %v522, %v530
  %v557 = vmul.f32 %v555, 1.442695
  %v558 = vpow.pop %v557
  %v559 = vmul.f32 %v556, 1.442695
  %v560 = vpow.pop %v559
  %v561 = vadd.f32 %v534, %v540
  %v562 = vadd.f32 %v536, %v542
  %v563 = vadd.f32 %v561, %v546
  %v564 = vadd.f32 %v562, %v548
  %v565 = vadd.f32 %v563, %v552
  %v566 = vadd.f32 %v564, %v554
  %v567 = vadd.f32 %v565, %v558
  %v568 = vadd.f32 %v566, %v560
  %v569 = vrcp.pop %v567
  %v570 = vrcp.pop %v568
  %v571 = vmul.f32 %v534, %v569
  %v572 = vmul.f32 %v536, %v570
  %v573 = vmul.f32 %v540, %v569
  %v574 = vmul.f32 %v542, %v570
  %v575 = vmul.f32 %v546, %v569
  %v576 = vmul.f32 %v548, %v570
  %v577 = vmul.f32 %v552, %v569
  %v578 = vmul.f32 %v554, %v570
  %v579 = vmul.f32 %v558, %v569
  %v580 = vmul.f32 %v560, %v570
  %v581 = vadd.f32 %v246, %v88
  %v582 = vadd.f32 %v248, %v90
  %v583 = vmul.f32 %v581, %v350
  %v584 = vmul.f32 %v582, %v351
  %v585 = vsel %vm364, %v583, 0.0
  %586 = vadd.xlane.f32.xlu0 %v585
  %v587 = vpop.xlane.xlu0 %586
  %v588 = vsel %vm364, %v584, 0.0
  %589 = vadd.xlane.f32.xlu0 %v588
  %v590 = vpop.xlane.xlu0 %589
  %v591 = vmul.f32 %v587, 0.15430336
  %v592 = vmul.f32 %v590, 0.15430336
  %v593 = vmul.f32 %v581, %v352
  %v594 = vmul.f32 %v582, %v353
  %v595 = vsel %vm364, %v593, 0.0
  %596 = vadd.xlane.f32.xlu0 %v595
  %v597 = vpop.xlane.xlu0 %596
  %v598 = vsel %vm364, %v594, 0.0
  %599 = vadd.xlane.f32.xlu0 %v598
  %v600 = vpop.xlane.xlu0 %599
  %v601 = vmul.f32 %v597, 0.15430336
  %v602 = vmul.f32 %v600, 0.15430336
  %v603 = vmul.f32 %v581, %v354
  %v604 = vmul.f32 %v582, %v355
  %v605 = vsel %vm364, %v603, 0.0
  %606 = vadd.xlane.f32.xlu0 %v605
  %v607 = vpop.xlane.xlu0 %606
  %v608 = vsel %vm364, %v604, 0.0
  %609 = vadd.xlane.f32.xlu0 %v608
  %v610 = vpop.xlane.xlu0 %609
  %v611 = vmul.f32 %v607, 0.15430336
  %v612 = vmul.f32 %v610, 0.15430336
  %v613 = vmul.f32 %v581, %v356
  %v614 = vmul.f32 %v582, %v357
  %v615 = vsel %vm364, %v613, 0.0
  %616 = vadd.xlane.f32.xlu0 %v615
  %v617 = vpop.xlane.xlu0 %616
  %v618 = vsel %vm364, %v614, 0.0
  %619 = vadd.xlane.f32.xlu0 %v618
  %v620 = vpop.xlane.xlu0 %619
  %v621 = vmul.f32 %v617, 0.15430336
  %v622 = vmul.f32 %v620, 0.15430336
  %v623 = vmul.f32 %v581, %v358
  %v624 = vmul.f32 %v582, %v359
  %v625 = vsel %vm364, %v623, 0.0
  %626 = vadd.xlane.f32.xlu0 %v625
  %v627 = vpop.xlane.xlu0 %626
  %v628 = vsel %vm364, %v624, 0.0
  %629 = vadd.xlane.f32.xlu0 %v628
  %v630 = vpop.xlane.xlu0 %629
  %v631 = vmul.f32 %v627, 0.15430336
  %v632 = vmul.f32 %v630, 0.15430336
  %v633 = vmax.f32 %v591, %v601
  %v634 = vmax.f32 %v592, %v602
  %v635 = vmax.f32 %v633, %v611
  %v636 = vmax.f32 %v634, %v612
  %v637 = vmax.f32 %v635, %v621
  %v638 = vmax.f32 %v636, %v622
  %v639 = vmax.f32 %v637, %v631
  %v640 = vmax.f32 %v638, %v632
  %v641 = vsub.f32 %v591, %v639
  %v642 = vsub.f32 %v592, %v640
  %v643 = vmul.f32 %v641, 1.442695
  %v644 = vpow.pop %v643
  %v645 = vmul.f32 %v642, 1.442695
  %v646 = vpow.pop %v645
  %v647 = vsub.f32 %v601, %v639
  %v648 = vsub.f32 %v602, %v640
  %v649 = vmul.f32 %v647, 1.442695
  %v650 = vpow.pop %v649
  %v651 = vmul.f32 %v648, 1.442695
  %v652 = vpow.pop %v651
  %v653 = vsub.f32 %v611, %v639
  %v654 = vsub.f32 %v612, %v640
  %v655 = vmul.f32 %v653, 1.442695
  %v656 = vpow.pop %v655
  %v657 = vmul.f32 %v654, 1.442695
  %v658 = vpow.pop %v657
  %v659 = vsub.f32 %v621, %v639
  %v660 = vsub.f32 %v622, %v640
  %v661 = vmul.f32 %v659, 1.442695
  %v662 = vpow.pop %v661
  %v663 = vmul.f32 %v660, 1.442695
  %v664 = vpow.pop %v663
  %v665 = vsub.f32 %v631, %v639
  %v666 = vsub.f32 %v632, %v640
  %v667 = vmul.f32 %v665, 1.442695
  %v668 = vpow.pop %v667
  %v669 = vmul.f32 %v666, 1.442695
  %v670 = vpow.pop %v669
  %v671 = vadd.f32 %v644, %v650
  %v672 = vadd.f32 %v646, %v652
  %v673 = vadd.f32 %v671, %v656
  %v674 = vadd.f32 %v672, %v658
  %v675 = vadd.f32 %v673, %v662
  %v676 = vadd.f32 %v674, %v664
  %v677 = vadd.f32 %v675, %v668
  %v678 = vadd.f32 %v676, %v670
  %v679 = vrcp.pop %v677
  %v680 = vrcp.pop %v678
  %v681 = vmul.f32 %v644, %v679
  %v682 = vmul.f32 %v646, %v680
  %v683 = vmul.f32 %v650, %v679
  %v684 = vmul.f32 %v652, %v680
  %v685 = vmul.f32 %v656, %v679
  %v686 = vmul.f32 %v658, %v680
  %v687 = vmul.f32 %v662, %v679
  %v688 = vmul.f32 %v664, %v680
  %v689 = vmul.f32 %v668, %v679
  %v690 = vmul.f32 %v670, %v680
  %v691 = vadd.f32 %v251, %v88
  %v692 = vadd.f32 %v253, %v90
  %v693 = vmul.f32 %v691, %v350
  %v694 = vmul.f32 %v692, %v351
  %v695 = vsel %vm364, %v693, 0.0
  %696 = vadd.xlane.f32.xlu0 %v695
  %v697 = vpop.xlane.xlu0 %696
  %v698 = vsel %vm364, %v694, 0.0
  %699 = vadd.xlane.f32.xlu0 %v698
  %v700 = vpop.xlane.xlu0 %699
  %v701 = vmul.f32 %v697, 0.15430336
  %v702 = vmul.f32 %v700, 0.15430336
  %v703 = vmul.f32 %v691, %v352
  %v704 = vmul.f32 %v692, %v353
  %v705 = vsel %vm364, %v703, 0.0
  %706 = vadd.xlane.f32.xlu0 %v705
  %v707 = vpop.xlane.xlu0 %706
  %v708 = vsel %vm364, %v704, 0.0
  %709 = vadd.xlane.f32.xlu0 %v708
  %v710 = vpop.xlane.xlu0 %709
  %v711 = vmul.f32 %v707, 0.15430336
  %v712 = vmul.f32 %v710, 0.15430336
  %v713 = vmul.f32 %v691, %v354
  %v714 = vmul.f32 %v692, %v355
  %v715 = vsel %vm364, %v713, 0.0
  %716 = vadd.xlane.f32.xlu0 %v715
  %v717 = vpop.xlane.xlu0 %716
  %v718 = vsel %vm364, %v714, 0.0
  %719 = vadd.xlane.f32.xlu0 %v718
  %v720 = vpop.xlane.xlu0 %719
  %v721 = vmul.f32 %v717, 0.15430336
  %v722 = vmul.f32 %v720, 0.15430336
  %v723 = vmul.f32 %v691, %v356
  %v724 = vmul.f32 %v692, %v357
  %v725 = vsel %vm364, %v723, 0.0
  %726 = vadd.xlane.f32.xlu0 %v725
  %v727 = vpop.xlane.xlu0 %726
  %v728 = vsel %vm364, %v724, 0.0
  %729 = vadd.xlane.f32.xlu0 %v728
  %v730 = vpop.xlane.xlu0 %729
  %v731 = vmul.f32 %v727, 0.15430336
  %v732 = vmul.f32 %v730, 0.15430336
  %v733 = vmul.f32 %v691, %v358
  %v734 = vmul.f32 %v692, %v359
  %v735 = vsel %vm364, %v733, 0.0
  %736 = vadd.xlane.f32.xlu0 %v735
  %v737 = vpop.xlane.xlu0 %736
  %v738 = vsel %vm364, %v734, 0.0
  %739 = vadd.xlane.f32.xlu0 %v738
  %v740 = vpop.xlane.xlu0 %739
  %v741 = vmul.f32 %v737, 0.15430336
  %v742 = vmul.f32 %v740, 0.15430336
  %v743 = vmax.f32 %v701, %v711
  %v744 = vmax.f32 %v702, %v712
  %v745 = vmax.f32 %v743, %v721
  %v746 = vmax.f32 %v744, %v722
  %v747 = vmax.f32 %v745, %v731
  %v748 = vmax.f32 %v746, %v732
  %v749 = vmax.f32 %v747, %v741
  %v750 = vmax.f32 %v748, %v742
  %v751 = vsub.f32 %v701, %v749
  %v752 = vsub.f32 %v702, %v750
  %v753 = vmul.f32 %v751, 1.442695
  %v754 = vpow.pop %v753
  %v755 = vmul.f32 %v752, 1.442695
  %v756 = vpow.pop %v755
  %v757 = vsub.f32 %v711, %v749
  %v758 = vsub.f32 %v712, %v750
  %v759 = vmul.f32 %v757, 1.442695
  %v760 = vpow.pop %v759
  %v761 = vmul.f32 %v758, 1.442695
  %v762 = vpow.pop %v761
  %v763 = vsub.f32 %v721, %v749
  %v764 = vsub.f32 %v722, %v750
  %v765 = vmul.f32 %v763, 1.442695
  %v766 = vpow.pop %v765
  %v767 = vmul.f32 %v764, 1.442695
  %v768 = vpow.pop %v767
  %v769 = vsub.f32 %v731, %v749
  %v770 = vsub.f32 %v732, %v750
  %v771 = vmul.f32 %v769, 1.442695
  %v772 = vpow.pop %v771
  %v773 = vmul.f32 %v770, 1.442695
  %v774 = vpow.pop %v773
  %v775 = vsub.f32 %v741, %v749
  %v776 = vsub.f32 %v742, %v750
  %v777 = vmul.f32 %v775, 1.442695
  %v778 = vpow.pop %v777
  %v779 = vmul.f32 %v776, 1.442695
  %v780 = vpow.pop %v779
  %v781 = vadd.f32 %v754, %v760
  %v782 = vadd.f32 %v756, %v762
  %v783 = vadd.f32 %v781, %v766
  %v784 = vadd.f32 %v782, %v768
  %v785 = vadd.f32 %v783, %v772
  %v786 = vadd.f32 %v784, %v774
  %v787 = vadd.f32 %v785, %v778
  %v788 = vadd.f32 %v786, %v780
  %v789 = vrcp.pop %v787
  %v790 = vrcp.pop %v788
  %v791 = vmul.f32 %v754, %v789
  %v792 = vmul.f32 %v756, %v790
  %v793 = vmul.f32 %v760, %v789
  %v794 = vmul.f32 %v762, %v790
  %v795 = vmul.f32 %v766, %v789
  %v796 = vmul.f32 %v768, %v790
  %v797 = vmul.f32 %v772, %v789
  %v798 = vmul.f32 %v774, %v790
  %v799 = vmul.f32 %v778, %v789
  %v800 = vmul.f32 %v780, %v790
  %v801 = vadd.f32 %v256, %v88
  %v802 = vadd.f32 %v258, %v90
  %v803 = vmul.f32 %v801, %v350
  %v804 = vmul.f32 %v802, %v351
  %v805 = vsel %vm364, %v803, 0.0
  %806 = vadd.xlane.f32.xlu0 %v805
  %v807 = vpop.xlane.xlu0 %806
  %v808 = vsel %vm364, %v804, 0.0
  %809 = vadd.xlane.f32.xlu0 %v808
  %v810 = vpop.xlane.xlu0 %809
  %v811 = vmul.f32 %v807, 0.15430336
  %v812 = vmul.f32 %v810, 0.15430336
  %v813 = vmul.f32 %v801, %v352
  %v814 = vmul.f32 %v802, %v353
  %v815 = vsel %vm364, %v813, 0.0
  %816 = vadd.xlane.f32.xlu0 %v815
  %v817 = vpop.xlane.xlu0 %816
  %v818 = vsel %vm364, %v814, 0.0
  %819 = vadd.xlane.f32.xlu0 %v818
  %v820 = vpop.xlane.xlu0 %819
  %v821 = vmul.f32 %v817, 0.15430336
  %v822 = vmul.f32 %v820, 0.15430336
  %v823 = vmul.f32 %v801, %v354
  %v824 = vmul.f32 %v802, %v355
  %v825 = vsel %vm364, %v823, 0.0
  %826 = vadd.xlane.f32.xlu0 %v825
  %v827 = vpop.xlane.xlu0 %826
  %v828 = vsel %vm364, %v824, 0.0
  %829 = vadd.xlane.f32.xlu0 %v828
  %v830 = vpop.xlane.xlu0 %829
  %v831 = vmul.f32 %v827, 0.15430336
  %v832 = vmul.f32 %v830, 0.15430336
  %v833 = vmul.f32 %v801, %v356
  %v834 = vmul.f32 %v802, %v357
  %v835 = vsel %vm364, %v833, 0.0
  %836 = vadd.xlane.f32.xlu0 %v835
  %v837 = vpop.xlane.xlu0 %836
  %v838 = vsel %vm364, %v834, 0.0
  %839 = vadd.xlane.f32.xlu0 %v838
  %v840 = vpop.xlane.xlu0 %839
  %v841 = vmul.f32 %v837, 0.15430336
  %v842 = vmul.f32 %v840, 0.15430336
  %v843 = vmul.f32 %v801, %v358
  %v844 = vmul.f32 %v802, %v359
  %v845 = vsel %vm364, %v843, 0.0
  %846 = vadd.xlane.f32.xlu0 %v845
  %v847 = vpop.xlane.xlu0 %846
  %v848 = vsel %vm364, %v844, 0.0
  %849 = vadd.xlane.f32.xlu0 %v848
  %v850 = vpop.xlane.xlu0 %849
  %v851 = vmul.f32 %v847, 0.15430336
  %v852 = vmul.f32 %v850, 0.15430336
  %v853 = vmax.f32 %v811, %v821
  %v854 = vmax.f32 %v812, %v822
  %v855 = vmax.f32 %v853, %v831
  %v856 = vmax.f32 %v854, %v832
  %v857 = vmax.f32 %v855, %v841
  %v858 = vmax.f32 %v856, %v842
  %v859 = vmax.f32 %v857, %v851
  %v860 = vmax.f32 %v858, %v852
  %v861 = vsub.f32 %v811, %v859
  %v862 = vsub.f32 %v812, %v860
  %v863 = vmul.f32 %v861, 1.442695
  %v864 = vpow.pop %v863
  %v865 = vmul.f32 %v862, 1.442695
  %v866 = vpow.pop %v865
  %v867 = vsub.f32 %v821, %v859
  %v868 = vsub.f32 %v822, %v860
  %v869 = vmul.f32 %v867, 1.442695
  %v870 = vpow.pop %v869
  %v871 = vmul.f32 %v868, 1.442695
  %v872 = vpow.pop %v871
  %v873 = vsub.f32 %v831, %v859
  %v874 = vsub.f32 %v832, %v860
  %v875 = vmul.f32 %v873, 1.442695
  %v876 = vpow.pop %v875
  %v877 = vmul.f32 %v874, 1.442695
  %v878 = vpow.pop %v877
  %v879 = vsub.f32 %v841, %v859
  %v880 = vsub.f32 %v842, %v860
  %v881 = vmul.f32 %v879, 1.442695
  %v882 = vpow.pop %v881
  %v883 = vmul.f32 %v880, 1.442695
  %v884 = vpow.pop %v883
  %v885 = vsub.f32 %v851, %v859
  %v886 = vsub.f32 %v852, %v860
  %v887 = vmul.f32 %v885, 1.442695
  %v888 = vpow.pop %v887
  %v889 = vmul.f32 %v886, 1.442695
  %v890 = vpow.pop %v889
  %v891 = vadd.f32 %v864, %v870
  %v892 = vadd.f32 %v866, %v872
  %v893 = vadd.f32 %v891, %v876
  %v894 = vadd.f32 %v892, %v878
  %v895 = vadd.f32 %v893, %v882
  %v896 = vadd.f32 %v894, %v884
  %v897 = vadd.f32 %v895, %v888
  %v898 = vadd.f32 %v896, %v890
  %v899 = vrcp.pop %v897
  %v900 = vrcp.pop %v898
  %v901 = vmul.f32 %v864, %v899
  %v902 = vmul.f32 %v866, %v900
  %v903 = vmul.f32 %v870, %v899
  %v904 = vmul.f32 %v872, %v900
  %v905 = vmul.f32 %v876, %v899
  %v906 = vmul.f32 %v878, %v900
  %v907 = vmul.f32 %v882, %v899
  %v908 = vmul.f32 %v884, %v900
  %v909 = vmul.f32 %v888, %v899
  %v910 = vmul.f32 %v890, %v900
  %v911 = vadd.f32 %v326, %v160
  %v912 = vadd.f32 %v328, %v162
  %v913 = vmul.f32 %v461, %v911
  %v914 = vmul.f32 %v462, %v912
  %v915 = vmul.f32 %v571, %v911
  %v916 = vmul.f32 %v572, %v912
  %v917 = vmul.f32 %v681, %v911
  %v918 = vmul.f32 %v682, %v912
  %v919 = vmul.f32 %v791, %v911
  %v920 = vmul.f32 %v792, %v912
  %v921 = vmul.f32 %v901, %v911
  %v922 = vmul.f32 %v902, %v912
  %v923 = vadd.f32 %v331, %v160
  %v924 = vadd.f32 %v333, %v162
  %v925 = vmul.f32 %v463, %v923
  %v926 = vmul.f32 %v464, %v924
  %v927 = vadd.f32 %v913, %v925
  %v928 = vadd.f32 %v914, %v926
  %v929 = vmul.f32 %v573, %v923
  %v930 = vmul.f32 %v574, %v924
  %v931 = vadd.f32 %v915, %v929
  %v932 = vadd.f32 %v916, %v930
  %v933 = vmul.f32 %v683, %v923
  %v934 = vmul.f32 %v684, %v924
  %v935 = vadd.f32 %v917, %v933
  %v936 = vadd.f32 %v918, %v934
  %v937 = vmul.f32 %v793, %v923
  %v938 = vmul.f32 %v794, %v924
  %v939 = vadd.f32 %v919, %v937
  %v940 = vadd.f32 %v920, %v938
  %v941 = vmul.f32 %v903, %v923
  %v942 = vmul.f32 %v904, %v924
  %v943 = vadd.f32 %v921, %v941
  %v944 = vadd.f32 %v922, %v942
  %v945 = vadd.f32 %v336, %v160
  %v946 = vadd.f32 %v338, %v162
  %v947 = vmul.f32 %v465, %v945
  %v948 = vmul.f32 %v466, %v946
  %v949 = vadd.f32 %v927, %v947
  %v950 = vadd.f32 %v928, %v948
  %v951 = vmul.f32 %v575, %v945
  %v952 = vmul.f32 %v576, %v946
  %v953 = vadd.f32 %v931, %v951
  %v954 = vadd.f32 %v932, %v952
  %v955 = vmul.f32 %v685, %v945
  %v956 = vmul.f32 %v686, %v946
  %v957 = vadd.f32 %v935, %v955
  %v958 = vadd.f32 %v936, %v956
  %v959 = vmul.f32 %v795, %v945
  %v960 = vmul.f32 %v796, %v946
  %v961 = vadd.f32 %v939, %v959
  %v962 = vadd.f32 %v940, %v960
  %v963 = vmul.f32 %v905, %v945
  %v964 = vmul.f32 %v906, %v946
  %v965 = vadd.f32 %v943, %v963
  %v966 = vadd.f32 %v944, %v964
  %v967 = vadd.f32 %v341, %v160
  %v968 = vadd.f32 %v343, %v162
  %v969 = vmul.f32 %v467, %v967
  %v970 = vmul.f32 %v468, %v968
  %v971 = vadd.f32 %v949, %v969
  %v972 = vadd.f32 %v950, %v970
  %v973 = vmul.f32 %v577, %v967
  %v974 = vmul.f32 %v578, %v968
  %v975 = vadd.f32 %v953, %v973
  %v976 = vadd.f32 %v954, %v974
  %v977 = vmul.f32 %v687, %v967
  %v978 = vmul.f32 %v688, %v968
  %v979 = vadd.f32 %v957, %v977
  %v980 = vadd.f32 %v958, %v978
  %v981 = vmul.f32 %v797, %v967
  %v982 = vmul.f32 %v798, %v968
  %v983 = vadd.f32 %v961, %v981
  %v984 = vadd.f32 %v962, %v982
  %v985 = vmul.f32 %v907, %v967
  %v986 = vmul.f32 %v908, %v968
  %v987 = vadd.f32 %v965, %v985
  %v988 = vadd.f32 %v966, %v986
  %v989 = vadd.f32 %v346, %v160
  %v990 = vadd.f32 %v348, %v162
  %v991 = vmul.f32 %v469, %v989
  %v992 = vmul.f32 %v470, %v990
  %v993 = vadd.f32 %v971, %v991
  %v994 = vadd.f32 %v972, %v992
  %v995 = vmul.f32 %v579, %v989
  %v996 = vmul.f32 %v580, %v990
  %v997 = vadd.f32 %v975, %v995
  %v998 = vadd.f32 %v976, %v996
  %v999 = vmul.f32 %v689, %v989
  %v1000 = vmul.f32 %v690, %v990
  %v1001 = vadd.f32 %v979, %v999
  %v1002 = vadd.f32 %v980, %v1000
  %v1003 = vmul.f32 %v799, %v989
  %v1004 = vmul.f32 %v800, %v990
  %v1005 = vadd.f32 %v983, %v1003
  %v1006 = vadd.f32 %v984, %v1004
  %v1007 = vmul.f32 %v909, %v989
  %v1008 = vmul.f32 %v910, %v990
  %v1009 = vadd.f32 %v987, %v1007
  %v1010 = vadd.f32 %v988, %v1008
  %v1011 = vsel %vm364, %v993, 0.0
  %v1012 = vsel %vm364, %v994, 0.0
  %v1013 = vpack.c.bf16 %v1011, %v1011
  %v1014 = vpack.c.bf16 %v1012, %v1012
  %1015 = vst [vmem:[#allocation2] sm:$0xf] %v1013
  %1016 = vst [vmem:[#allocation2 + $0x14] sm:$0xf] %v1014
  %v1017 = vsel %vm364, %v997, 0.0
  %v1018 = vsel %vm364, %v998, 0.0
  %v1019 = vpack.c.bf16 %v1017, %v1017
  %v1020 = vpack.c.bf16 %v1018, %v1018
  %1021 = vst [vmem:[#allocation2 + $0x4] sm:$0xf] %v1019
  %1022 = vst [vmem:[#allocation2 + $0x18] sm:$0xf] %v1020
  %v1023 = vsel %vm364, %v1001, 0.0
  %v1024 = vsel %vm364, %v1002, 0.0
  %v1025 = vpack.c.bf16 %v1023, %v1023
  %v1026 = vpack.c.bf16 %v1024, %v1024
  %1027 = vst [vmem:[#allocation2 + $0x8] sm:$0xf] %v1025
  %1028 = vst [vmem:[#allocation2 + $0x1c] sm:$0xf] %v1026
  %v1029 = vsel %vm364, %v1005, 0.0
  %v1030 = vsel %vm364, %v1006, 0.0
  %v1031 = vpack.c.bf16 %v1029, %v1029
  %v1032 = vpack.c.bf16 %v1030, %v1030
  %1033 = vst [vmem:[#allocation2 + $0xc] sm:$0xf] %v1031
  %1034 = vst [vmem:[#allocation2 + $0x20] sm:$0xf] %v1032
  %v1035 = vsel %vm364, %v1009, 0.0
  %v1036 = vsel %vm364, %v1010, 0.0
  %v1037 = vpack.c.bf16 %v1035, %v1035
  %v1038 = vpack.c.bf16 %v1036, %v1036
  %1039 = vst [vmem:[#allocation2 + $0x10] sm:$0xf] %v1037
  %1040 = vst [vmem:[#allocation2 + $0x24] sm:$0xf] %v1038
  %v1041 = vld [vmem:[#allocation2] sm:$0xff]
  %v1042 = vld [vmem:[#allocation2 + $0x8] sm:$0xff]
  %v1043 = vld [vmem:[#allocation2 + $0x10] sm:$0xf]
  %v1044 = vld [vmem:[#allocation2 + $0x14] sm:$0xff]
  %v1045 = vld [vmem:[#allocation2 + $0x1c] sm:$0xff]
  %v1046 = vld [vmem:[#allocation2 + $0x24] sm:$0xf]
  %v1047 = vld [vmem:[%s5] sm:$0xff]
  %v1048 = vld [vmem:[%s5 + $0x8] sm:$0xff]
  %v1049 = vld [vmem:[%s5 + $0x10] sm:$0xff]
  %v1050 = vld [vmem:[%s5 + $0x18] sm:$0xff]
  %v1051 = vld [vmem:[%s5 + $0x20] sm:$0xff]
  %v1052 = vld [vmem:[%s5 + $0x28] sm:$0xff]
  %v1053 = vld [vmem:[%s5 + $0x30] sm:$0xff]
  %v1054 = vld [vmem:[%s5 + $0x38] sm:$0xff]
  %v1055 = vld [vmem:[%s5 + $0x40] sm:$0xff]
  %v1056 = vld [vmem:[%s5 + $0x48] sm:$0xff]
  %v1057 = vld [vmem:[%s5 + $0x50] sm:$0xff]
  %v1058 = vld [vmem:[%s5 + $0x58] sm:$0xff]
  %v1059 = vld [vmem:[%s5 + $0x60] sm:$0xff]
  %v1060 = vld [vmem:[%s5 + $0x68] sm:$0xff]
  %v1061 = vld [vmem:[%s5 + $0x70] sm:$0xff]
  %v1062 = vld [vmem:[%s5 + $0x78] sm:$0xff]
  %v1063 = vld [vmem:[%s5 + $0x80] sm:$0xff]
  %v1064 = vld [vmem:[%s5 + $0x88] sm:$0xff]
  %v1065 = vld [vmem:[%s5 + $0x90] sm:$0xff]
  %v1066 = vld [vmem:[%s5 + $0x98] sm:$0xff]
  %v1067 = vld [vmem:[%s5 + $0xa0] sm:$0xff]
  %v1068 = vld [vmem:[%s5 + $0xa8] sm:$0xff]
  %v1069 = vld [vmem:[%s5 + $0xb0] sm:$0xff]
  %v1070 = vld [vmem:[%s5 + $0xb8] sm:$0xff]
  %v1071 = vld [vmem:[%s5 + $0xc0] sm:$0xff]
  %v1072 = vld [vmem:[%s5 + $0xc8] sm:$0xff]
  %v1073 = vld [vmem:[%s5 + $0xd0] sm:$0xff]
  %v1074 = vld [vmem:[%s5 + $0xd8] sm:$0xff]
  %v1075 = vld [vmem:[%s5 + $0xe0] sm:$0xff]
  %v1076 = vld [vmem:[%s5 + $0xe8] sm:$0xff]
  %v1077 = vld [vmem:[%s5 + $0xf0] sm:$0xff]
  %v1078 = vld [vmem:[%s5 + $0xf8] sm:$0xff]
  %v1079 = vld [vmem:[%s5 + $0x100] sm:$0xff]
  %v1080 = vld [vmem:[%s5 + $0x108] sm:$0xff]
  %v1081 = vld [vmem:[%s5 + $0x110] sm:$0xff]
  %v1082 = vld [vmem:[%s5 + $0x118] sm:$0xff]
  %v1083 = vld [vmem:[%s5 + $0x120] sm:$0xff]
  %v1084 = vld [vmem:[%s5 + $0x128] sm:$0xff]
  %v1085 = vld [vmem:[%s5 + $0x130] sm:$0xff]
  %v1086 = vld [vmem:[%s5 + $0x138] sm:$0xff]
  %v1087 = vld [vmem:[%s5 + $0x140] sm:$0xff]
  %v1088 = vld [vmem:[%s5 + $0x148] sm:$0xff]
  %v1089 = vld [vmem:[%s5 + $0x150] sm:$0xff]
  %v1090 = vld [vmem:[%s5 + $0x158] sm:$0xff]
  %v1091 = vld [vmem:[%s5 + $0x160] sm:$0xff]
  %v1092 = vld [vmem:[%s5 + $0x168] sm:$0xff]
  %v1093 = vld [vmem:[%s5 + $0x170] sm:$0xff]
  %v1094 = vld [vmem:[%s5 + $0x178] sm:$0xff]
  %v1095 = vld [vmem:[%s5 + $0x180] sm:$0xff]
  %v1096 = vld [vmem:[%s5 + $0x188] sm:$0xff]
  %v1097 = vld [vmem:[%s5 + $0x190] sm:$0xff]
  %v1098 = vld [vmem:[%s5 + $0x198] sm:$0xff]
  %v1099 = vld [vmem:[%s5 + $0x1a0] sm:$0xff]
  %v1100 = vld [vmem:[%s5 + $0x1a8] sm:$0xff]
  %v1101 = vld [vmem:[%s5 + $0x1b0] sm:$0xff]
  %v1102 = vld [vmem:[%s5 + $0x1b8] sm:$0xff]
  %v1103 = vld [vmem:[%s5 + $0x1c0] sm:$0xff]
  %v1104 = vld [vmem:[%s5 + $0x1c8] sm:$0xff]
  %v1105 = vld [vmem:[%s5 + $0x1d0] sm:$0xff]
  %v1106 = vld [vmem:[%s5 + $0x1d8] sm:$0xff]
  %v1107 = vld [vmem:[%s5 + $0x1e0] sm:$0xff]
  %v1108 = vld [vmem:[%s5 + $0x1e8] sm:$0xff]
  %v1109 = vld [vmem:[%s5 + $0x1f0] sm:$0xff]
  %v1110 = vld [vmem:[%s5 + $0x1f8] sm:$0xff]
  %v1111 = vld [vmem:[%s5 + $0x200] sm:$0xff]
  %v1112 = vld [vmem:[%s5 + $0x208] sm:$0xff]
  %v1113 = vld [vmem:[%s5 + $0x210] sm:$0xff]
  %v1114 = vld [vmem:[%s5 + $0x218] sm:$0xff]
  %v1115 = vld [vmem:[%s5 + $0x220] sm:$0xff]
  %v1116 = vld [vmem:[%s5 + $0x228] sm:$0xff]
  %v1117 = vld [vmem:[%s5 + $0x230] sm:$0xff]
  %v1118 = vld [vmem:[%s5 + $0x238] sm:$0xff]
  %v1119 = vld [vmem:[%s5 + $0x240] sm:$0xff]
  %v1120 = vld [vmem:[%s5 + $0x248] sm:$0xff]
  %v1121 = vld [vmem:[%s5 + $0x250] sm:$0xff]
  %v1122 = vld [vmem:[%s5 + $0x258] sm:$0xff]
  %v1123 = vld [vmem:[%s5 + $0x260] sm:$0xff]
  %v1124 = vld [vmem:[%s5 + $0x268] sm:$0xff]
  %v1125 = vld [vmem:[%s5 + $0x270] sm:$0xff]
  %v1126 = vld [vmem:[%s5 + $0x278] sm:$0xff]
  %v1127 = vld [vmem:[%s6] sm:$0x3]
  %v1129 = vperm.slane %v1127, 0
  %v1130 = vperm.slane %v1127, 1
  %v1139 = vunpack.c.l.b16 %v1041
  %v1140 = vunpack.c.h.b16 %v1041
  %v1141 = vunpack.c.l.b16 %v1042
  %v1142 = vunpack.c.h.b16 %v1042
  %v1143 = vunpack.c.l.b16 %v1043
  %v1144 = vunpack.c.l.b16 %v1044
  %v1145 = vunpack.c.h.b16 %v1044
  %v1146 = vunpack.c.l.b16 %v1045
  %v1147 = vunpack.c.h.b16 %v1045
  %v1148 = vunpack.c.l.b16 %v1046
  %v1149 = vpack.c.b16 %v1144, %v1139
  %v1150 = vpack.c.b16 %v1145, %v1140
  %v1151 = vpack.c.b16 %v1146, %v1141
  %v1152 = vpack.c.b16 %v1147, %v1142
  %v1153 = vpack.c.b16 %v1148, %v1143
  %v1239 = vunpack.c.l.b16 %v1047
  %v1240 = vunpack.c.h.b16 %v1047
  %v1241 = vunpack.c.l.b16 %v1048
  %v1242 = vunpack.c.h.b16 %v1048
  %v1243 = vunpack.c.l.b16 %v1049
  %v1244 = vunpack.c.h.b16 %v1049
  %v1245 = vunpack.c.l.b16 %v1050
  %v1246 = vunpack.c.h.b16 %v1050
  %v1247 = vunpack.c.l.b16 %v1051
  %v1248 = vunpack.c.h.b16 %v1051
  %v1249 = vunpack.c.l.b16 %v1052
  %v1250 = vunpack.c.h.b16 %v1052
  %v1251 = vunpack.c.l.b16 %v1053
  %v1252 = vunpack.c.h.b16 %v1053
  %v1253 = vunpack.c.l.b16 %v1054
  %v1254 = vunpack.c.h.b16 %v1054
  %v1255 = vunpack.c.l.b16 %v1055
  %v1256 = vunpack.c.h.b16 %v1055
  %v1257 = vunpack.c.l.b16 %v1056
  %v1258 = vunpack.c.h.b16 %v1056
  %v1259 = vunpack.c.l.b16 %v1057
  %v1260 = vunpack.c.h.b16 %v1057
  %v1261 = vunpack.c.l.b16 %v1058
  %v1262 = vunpack.c.h.b16 %v1058
  %v1263 = vunpack.c.l.b16 %v1059
  %v1264 = vunpack.c.h.b16 %v1059
  %v1265 = vunpack.c.l.b16 %v1060
  %v1266 = vunpack.c.h.b16 %v1060
  %v1267 = vunpack.c.l.b16 %v1061
  %v1268 = vunpack.c.h.b16 %v1061
  %v1269 = vunpack.c.l.b16 %v1062
  %v1270 = vunpack.c.h.b16 %v1062
  %v1271 = vunpack.c.l.b16 %v1063
  %v1272 = vunpack.c.h.b16 %v1063
  %v1273 = vunpack.c.l.b16 %v1064
  %v1274 = vunpack.c.h.b16 %v1064
  %v1275 = vunpack.c.l.b16 %v1065
  %v1276 = vunpack.c.h.b16 %v1065
  %v1277 = vunpack.c.l.b16 %v1066
  %v1278 = vunpack.c.h.b16 %v1066
  %v1279 = vunpack.c.l.b16 %v1067
  %v1280 = vunpack.c.h.b16 %v1067
  %v1281 = vunpack.c.l.b16 %v1068
  %v1282 = vunpack.c.h.b16 %v1068
  %v1283 = vunpack.c.l.b16 %v1069
  %v1284 = vunpack.c.h.b16 %v1069
  %v1285 = vunpack.c.l.b16 %v1070
  %v1286 = vunpack.c.h.b16 %v1070
  %v1287 = vunpack.c.l.b16 %v1071
  %v1288 = vunpack.c.h.b16 %v1071
  %v1289 = vunpack.c.l.b16 %v1072
  %v1290 = vunpack.c.h.b16 %v1072
  %v1291 = vunpack.c.l.b16 %v1073
  %v1292 = vunpack.c.h.b16 %v1073
  %v1293 = vunpack.c.l.b16 %v1074
  %v1294 = vunpack.c.h.b16 %v1074
  %v1295 = vunpack.c.l.b16 %v1075
  %v1296 = vunpack.c.h.b16 %v1075
  %v1297 = vunpack.c.l.b16 %v1076
  %v1298 = vunpack.c.h.b16 %v1076
  %v1299 = vunpack.c.l.b16 %v1077
  %v1300 = vunpack.c.h.b16 %v1077
  %v1301 = vunpack.c.l.b16 %v1078
  %v1302 = vunpack.c.h.b16 %v1078
  %v1303 = vunpack.c.l.b16 %v1079
  %v1304 = vunpack.c.h.b16 %v1079
  %v1305 = vunpack.c.l.b16 %v1080
  %v1306 = vunpack.c.h.b16 %v1080
  %v1307 = vunpack.c.l.b16 %v1081
  %v1308 = vunpack.c.h.b16 %v1081
  %v1309 = vunpack.c.l.b16 %v1082
  %v1310 = vunpack.c.h.b16 %v1082
  %v1311 = vunpack.c.l.b16 %v1083
  %v1312 = vunpack.c.h.b16 %v1083
  %v1313 = vunpack.c.l.b16 %v1084
  %v1314 = vunpack.c.h.b16 %v1084
  %v1315 = vunpack.c.l.b16 %v1085
  %v1316 = vunpack.c.h.b16 %v1085
  %v1317 = vunpack.c.l.b16 %v1086
  %v1318 = vunpack.c.h.b16 %v1086
  %v1319 = vunpack.c.l.b16 %v1087
  %v1320 = vunpack.c.h.b16 %v1087
  %v1321 = vunpack.c.l.b16 %v1088
  %v1322 = vunpack.c.h.b16 %v1088
  %v1323 = vunpack.c.l.b16 %v1089
  %v1324 = vunpack.c.h.b16 %v1089
  %v1325 = vunpack.c.l.b16 %v1090
  %v1326 = vunpack.c.h.b16 %v1090
  %v1327 = vunpack.c.l.b16 %v1091
  %v1328 = vunpack.c.h.b16 %v1091
  %v1329 = vunpack.c.l.b16 %v1092
  %v1330 = vunpack.c.h.b16 %v1092
  %v1331 = vunpack.c.l.b16 %v1093
  %v1332 = vunpack.c.h.b16 %v1093
  %v1333 = vunpack.c.l.b16 %v1094
  %v1334 = vunpack.c.h.b16 %v1094
  %v1335 = vunpack.c.l.b16 %v1095
  %v1336 = vunpack.c.h.b16 %v1095
  %v1337 = vunpack.c.l.b16 %v1096
  %v1338 = vunpack.c.h.b16 %v1096
  %v1339 = vunpack.c.l.b16 %v1097
  %v1340 = vunpack.c.h.b16 %v1097
  %v1341 = vunpack.c.l.b16 %v1098
  %v1342 = vunpack.c.h.b16 %v1098
  %v1343 = vunpack.c.l.b16 %v1099
  %v1344 = vunpack.c.h.b16 %v1099
  %v1345 = vunpack.c.l.b16 %v1100
  %v1346 = vunpack.c.h.b16 %v1100
  %v1347 = vunpack.c.l.b16 %v1101
  %v1348 = vunpack.c.h.b16 %v1101
  %v1349 = vunpack.c.l.b16 %v1102
  %v1350 = vunpack.c.h.b16 %v1102
  %v1351 = vunpack.c.l.b16 %v1103
  %v1352 = vunpack.c.h.b16 %v1103
  %v1353 = vunpack.c.l.b16 %v1104
  %v1354 = vunpack.c.h.b16 %v1104
  %v1355 = vunpack.c.l.b16 %v1105
  %v1356 = vunpack.c.h.b16 %v1105
  %v1357 = vunpack.c.l.b16 %v1106
  %v1358 = vunpack.c.h.b16 %v1106
  %v1359 = vunpack.c.l.b16 %v1107
  %v1360 = vunpack.c.h.b16 %v1107
  %v1361 = vunpack.c.l.b16 %v1108
  %v1362 = vunpack.c.h.b16 %v1108
  %v1363 = vunpack.c.l.b16 %v1109
  %v1364 = vunpack.c.h.b16 %v1109
  %v1365 = vunpack.c.l.b16 %v1110
  %v1366 = vunpack.c.h.b16 %v1110
  %v1367 = vunpack.c.l.b16 %v1111
  %v1368 = vunpack.c.h.b16 %v1111
  %v1369 = vunpack.c.l.b16 %v1112
  %v1370 = vunpack.c.h.b16 %v1112
  %v1371 = vunpack.c.l.b16 %v1113
  %v1372 = vunpack.c.h.b16 %v1113
  %v1373 = vunpack.c.l.b16 %v1114
  %v1374 = vunpack.c.h.b16 %v1114
  %v1375 = vunpack.c.l.b16 %v1115
  %v1376 = vunpack.c.h.b16 %v1115
  %v1377 = vunpack.c.l.b16 %v1116
  %v1378 = vunpack.c.h.b16 %v1116
  %v1379 = vunpack.c.l.b16 %v1117
  %v1380 = vunpack.c.h.b16 %v1117
  %v1381 = vunpack.c.l.b16 %v1118
  %v1382 = vunpack.c.h.b16 %v1118
  %v1383 = vunpack.c.l.b16 %v1119
  %v1384 = vunpack.c.h.b16 %v1119
  %v1385 = vunpack.c.l.b16 %v1120
  %v1386 = vunpack.c.h.b16 %v1120
  %v1387 = vunpack.c.l.b16 %v1121
  %v1388 = vunpack.c.h.b16 %v1121
  %v1389 = vunpack.c.l.b16 %v1122
  %v1390 = vunpack.c.h.b16 %v1122
  %v1391 = vunpack.c.l.b16 %v1123
  %v1392 = vunpack.c.h.b16 %v1123
  %v1393 = vunpack.c.l.b16 %v1124
  %v1394 = vunpack.c.h.b16 %v1124
  %v1395 = vunpack.c.l.b16 %v1125
  %v1396 = vunpack.c.h.b16 %v1125
  %v1397 = vunpack.c.l.b16 %v1126
  %v1398 = vunpack.c.h.b16 %v1126
  %v1399 = vpack.c.b16 %v1241, %v1239
  %v1400 = vpack.c.b16 %v1242, %v1240
  %v1401 = vpack.c.b16 %v1245, %v1243
  %v1402 = vpack.c.b16 %v1246, %v1244
  %v1403 = vpack.c.b16 %v1249, %v1247
  %v1404 = vpack.c.b16 %v1250, %v1248
  %v1405 = vpack.c.b16 %v1253, %v1251
  %v1406 = vpack.c.b16 %v1254, %v1252
  %v1407 = vpack.c.b16 %v1257, %v1255
  %v1408 = vpack.c.b16 %v1258, %v1256
  %v1409 = vpack.c.b16 %v1261, %v1259
  %v1410 = vpack.c.b16 %v1262, %v1260
  %v1411 = vpack.c.b16 %v1265, %v1263
  %v1412 = vpack.c.b16 %v1266, %v1264
  %v1413 = vpack.c.b16 %v1269, %v1267
  %v1414 = vpack.c.b16 %v1270, %v1268
  %v1415 = vpack.c.b16 %v1273, %v1271
  %v1416 = vpack.c.b16 %v1274, %v1272
  %v1417 = vpack.c.b16 %v1277, %v1275
  %v1418 = vpack.c.b16 %v1278, %v1276
  %v1419 = vpack.c.b16 %v1281, %v1279
  %v1420 = vpack.c.b16 %v1282, %v1280
  %v1421 = vpack.c.b16 %v1285, %v1283
  %v1422 = vpack.c.b16 %v1286, %v1284
  %v1423 = vpack.c.b16 %v1289, %v1287
  %v1424 = vpack.c.b16 %v1290, %v1288
  %v1425 = vpack.c.b16 %v1293, %v1291
  %v1426 = vpack.c.b16 %v1294, %v1292
  %v1427 = vpack.c.b16 %v1297, %v1295
  %v1428 = vpack.c.b16 %v1298, %v1296
  %v1429 = vpack.c.b16 %v1301, %v1299
  %v1430 = vpack.c.b16 %v1302, %v1300
  %v1431 = vpack.c.b16 %v1305, %v1303
  %v1432 = vpack.c.b16 %v1306, %v1304
  %v1433 = vpack.c.b16 %v1309, %v1307
  %v1434 = vpack.c.b16 %v1310, %v1308
  %v1435 = vpack.c.b16 %v1313, %v1311
  %v1436 = vpack.c.b16 %v1314, %v1312
  %v1437 = vpack.c.b16 %v1317, %v1315
  %v1438 = vpack.c.b16 %v1318, %v1316
  %v1439 = vpack.c.b16 %v1321, %v1319
  %v1440 = vpack.c.b16 %v1322, %v1320
  %v1441 = vpack.c.b16 %v1325, %v1323
  %v1442 = vpack.c.b16 %v1326, %v1324
  %v1443 = vpack.c.b16 %v1329, %v1327
  %v1444 = vpack.c.b16 %v1330, %v1328
  %v1445 = vpack.c.b16 %v1333, %v1331
  %v1446 = vpack.c.b16 %v1334, %v1332
  %v1447 = vpack.c.b16 %v1337, %v1335
  %v1448 = vpack.c.b16 %v1338, %v1336
  %v1449 = vpack.c.b16 %v1341, %v1339
  %v1450 = vpack.c.b16 %v1342, %v1340
  %v1451 = vpack.c.b16 %v1345, %v1343
  %v1452 = vpack.c.b16 %v1346, %v1344
  %v1453 = vpack.c.b16 %v1349, %v1347
  %v1454 = vpack.c.b16 %v1350, %v1348
  %v1455 = vpack.c.b16 %v1353, %v1351
  %v1456 = vpack.c.b16 %v1354, %v1352
  %v1457 = vpack.c.b16 %v1357, %v1355
  %v1458 = vpack.c.b16 %v1358, %v1356
  %v1459 = vpack.c.b16 %v1361, %v1359
  %v1460 = vpack.c.b16 %v1362, %v1360
  %v1461 = vpack.c.b16 %v1365, %v1363
  %v1462 = vpack.c.b16 %v1366, %v1364
  %v1463 = vpack.c.b16 %v1369, %v1367
  %v1464 = vpack.c.b16 %v1370, %v1368
  %v1465 = vpack.c.b16 %v1373, %v1371
  %v1466 = vpack.c.b16 %v1374, %v1372
  %v1467 = vpack.c.b16 %v1377, %v1375
  %v1468 = vpack.c.b16 %v1378, %v1376
  %v1469 = vpack.c.b16 %v1381, %v1379
  %v1470 = vpack.c.b16 %v1382, %v1380
  %v1471 = vpack.c.b16 %v1385, %v1383
  %v1472 = vpack.c.b16 %v1386, %v1384
  %v1473 = vpack.c.b16 %v1389, %v1387
  %v1474 = vpack.c.b16 %v1390, %v1388
  %v1475 = vpack.c.b16 %v1393, %v1391
  %v1476 = vpack.c.b16 %v1394, %v1392
  %v1477 = vpack.c.b16 %v1397, %v1395
  %v1478 = vpack.c.b16 %v1398, %v1396
  %1559 = vmatpush.bf16.msra.mxu0 %v1413
  %1560 = vmatpush.bf16.msra.mxu0 %v1411
  %1561 = vmatpush.bf16.msra.mxu0 %v1409
  %1562 = vmatpush.bf16.msra.mxu0 %v1407
  %1563 = vmatpush.bf16.msra.mxu0 %v1405
  %1564 = vmatpush.bf16.msra.mxu0 %v1403
  %1565 = vmatpush.bf16.msra.mxu0 %v1401
  %1566 = vmatpush.bf16.msra.mxu0 %v1399
  %1567 = vmatmul.bf16.gmra.mxu0 %v1149
  %v1568 = vpop.f32.mrf.mxu0
  %v1569 = vadd.f32 %v1129, %v1568
  %v1570 = vpop.f32.mrf.mxu0
  %v1571 = vadd.f32 %v1129, %v1570
  %1572 = vdwg.mxu0
  %1573 = vmatpush.bf16.msra.mxu0 %v1429
  %1574 = vmatpush.bf16.msra.mxu0 %v1427
  %1575 = vmatpush.bf16.msra.mxu0 %v1425
  %1576 = vmatpush.bf16.msra.mxu0 %v1423
  %1577 = vmatpush.bf16.msra.mxu0 %v1421
  %1578 = vmatpush.bf16.msra.mxu0 %v1419
  %1579 = vmatpush.bf16.msra.mxu0 %v1417
  %1580 = vmatpush.bf16.msra.mxu0 %v1415
  %1581 = vmatmul.bf16.gmra.mxu0 %v1150
  %v1582 = vpop.f32.mrf.mxu0
  %v1583 = vadd.f32 %v1569, %v1582
  %v1584 = vpop.f32.mrf.mxu0
  %v1585 = vadd.f32 %v1571, %v1584
  %1586 = vdwg.mxu0
  %1587 = vmatpush.bf16.msra.mxu0 %v1445
  %1588 = vmatpush.bf16.msra.mxu0 %v1443
  %1589 = vmatpush.bf16.msra.mxu0 %v1441
  %1590 = vmatpush.bf16.msra.mxu0 %v1439
  %1591 = vmatpush.bf16.msra.mxu0 %v1437
  %1592 = vmatpush.bf16.msra.mxu0 %v1435
  %1593 = vmatpush.bf16.msra.mxu0 %v1433
  %1594 = vmatpush.bf16.msra.mxu0 %v1431
  %1595 = vmatmul.bf16.gmra.mxu0 %v1151
  %v1596 = vpop.f32.mrf.mxu0
  %v1597 = vadd.f32 %v1583, %v1596
  %v1598 = vpop.f32.mrf.mxu0
  %v1599 = vadd.f32 %v1585, %v1598
  %1600 = vdwg.mxu0
  %1601 = vmatpush.bf16.msra.mxu0 %v1461
  %1602 = vmatpush.bf16.msra.mxu0 %v1459
  %1603 = vmatpush.bf16.msra.mxu0 %v1457
  %1604 = vmatpush.bf16.msra.mxu0 %v1455
  %1605 = vmatpush.bf16.msra.mxu0 %v1453
  %1606 = vmatpush.bf16.msra.mxu0 %v1451
  %1607 = vmatpush.bf16.msra.mxu0 %v1449
  %1608 = vmatpush.bf16.msra.mxu0 %v1447
  %1609 = vmatmul.bf16.gmra.mxu0 %v1152
  %v1610 = vpop.f32.mrf.mxu0
  %v1611 = vadd.f32 %v1597, %v1610
  %v1612 = vpop.f32.mrf.mxu0
  %v1613 = vadd.f32 %v1599, %v1612
  %1614 = vdwg.mxu0
  %1615 = vmatpush.bf16.msra.mxu0 %v1477
  %1616 = vmatpush.bf16.msra.mxu0 %v1475
  %1617 = vmatpush.bf16.msra.mxu0 %v1473
  %1618 = vmatpush.bf16.msra.mxu0 %v1471
  %1619 = vmatpush.bf16.msra.mxu0 %v1469
  %1620 = vmatpush.bf16.msra.mxu0 %v1467
  %1621 = vmatpush.bf16.msra.mxu0 %v1465
  %1622 = vmatpush.bf16.msra.mxu0 %v1463
  %1623 = vmatmul.bf16.gmra.mxu0 %v1153
  %v1624 = vpop.f32.mrf.mxu0
  %v1625 = vadd.f32 %v1611, %v1624
  %v1626 = vpop.f32.mrf.mxu0
  %v1627 = vadd.f32 %v1613, %v1626
  %1628 = vdwg.mxu0
  %1629 = vmatpush.bf16.msra.mxu0 %v1414
  %1630 = vmatpush.bf16.msra.mxu0 %v1412
  %1631 = vmatpush.bf16.msra.mxu0 %v1410
  %1632 = vmatpush.bf16.msra.mxu0 %v1408
  %1633 = vmatpush.bf16.msra.mxu0 %v1406
  %1634 = vmatpush.bf16.msra.mxu0 %v1404
  %1635 = vmatpush.bf16.msra.mxu0 %v1402
  %1636 = vmatpush.bf16.msra.mxu0 %v1400
  %1637 = vmatmul.bf16.gmra.mxu0 %v1149
  %v1638 = vpop.f32.mrf.mxu0
  %v1639 = vadd.f32 %v1130, %v1638
  %v1640 = vpop.f32.mrf.mxu0
  %v1641 = vadd.f32 %v1130, %v1640
  %1642 = vdwg.mxu0
  %1643 = vmatpush.bf16.msra.mxu0 %v1430
  %1644 = vmatpush.bf16.msra.mxu0 %v1428
  %1645 = vmatpush.bf16.msra.mxu0 %v1426
  %1646 = vmatpush.bf16.msra.mxu0 %v1424
  %1647 = vmatpush.bf16.msra.mxu0 %v1422
  %1648 = vmatpush.bf16.msra.mxu0 %v1420
  %1649 = vmatpush.bf16.msra.mxu0 %v1418
  %1650 = vmatpush.bf16.msra.mxu0 %v1416
  %1651 = vmatmul.bf16.gmra.mxu0 %v1150
  %v1652 = vpop.f32.mrf.mxu0
  %v1653 = vadd.f32 %v1639, %v1652
  %v1654 = vpop.f32.mrf.mxu0
  %v1655 = vadd.f32 %v1641, %v1654
  %1656 = vdwg.mxu0
  %1657 = vmatpush.bf16.msra.mxu0 %v1446
  %1658 = vmatpush.bf16.msra.mxu0 %v1444
  %1659 = vmatpush.bf16.msra.mxu0 %v1442
  %1660 = vmatpush.bf16.msra.mxu0 %v1440
  %1661 = vmatpush.bf16.msra.mxu0 %v1438
  %1662 = vmatpush.bf16.msra.mxu0 %v1436
  %1663 = vmatpush.bf16.msra.mxu0 %v1434
  %1664 = vmatpush.bf16.msra.mxu0 %v1432
  %1665 = vmatmul.bf16.gmra.mxu0 %v1151
  %v1666 = vpop.f32.mrf.mxu0
  %v1667 = vadd.f32 %v1653, %v1666
  %v1668 = vpop.f32.mrf.mxu0
  %v1669 = vadd.f32 %v1655, %v1668
  %1670 = vdwg.mxu0
  %1671 = vmatpush.bf16.msra.mxu0 %v1462
  %1672 = vmatpush.bf16.msra.mxu0 %v1460
  %1673 = vmatpush.bf16.msra.mxu0 %v1458
  %1674 = vmatpush.bf16.msra.mxu0 %v1456
  %1675 = vmatpush.bf16.msra.mxu0 %v1454
  %1676 = vmatpush.bf16.msra.mxu0 %v1452
  %1677 = vmatpush.bf16.msra.mxu0 %v1450
  %1678 = vmatpush.bf16.msra.mxu0 %v1448
  %1679 = vmatmul.bf16.gmra.mxu0 %v1152
  %v1680 = vpop.f32.mrf.mxu0
  %v1681 = vadd.f32 %v1667, %v1680
  %v1682 = vpop.f32.mrf.mxu0
  %v1683 = vadd.f32 %v1669, %v1682
  %1684 = vdwg.mxu0
  %1685 = vmatpush.bf16.msra.mxu0 %v1478
  %1686 = vmatpush.bf16.msra.mxu0 %v1476
  %1687 = vmatpush.bf16.msra.mxu0 %v1474
  %1688 = vmatpush.bf16.msra.mxu0 %v1472
  %1689 = vmatpush.bf16.msra.mxu0 %v1470
  %1690 = vmatpush.bf16.msra.mxu0 %v1468
  %1691 = vmatpush.bf16.msra.mxu0 %v1466
  %1692 = vmatpush.bf16.msra.mxu0 %v1464
  %1693 = vmatmul.bf16.gmra.mxu0 %v1153
  %v1694 = vpop.f32.mrf.mxu0
  %v1695 = vadd.f32 %v1681, %v1694
  %v1696 = vpop.f32.mrf.mxu0
  %v1697 = vadd.f32 %v1683, %v1696
  %1698 = vdwg.mxu0
  %v1699 = vmax.f32 %v1625, 0.0
  %v1700 = vmax.f32 %v1695, 0.0
  %v1701 = vmax.f32 %v1627, 0.0
  %v1702 = vmax.f32 %v1697, 0.0
  %v1703 = vpack.c.bf16 %v1701, %v1699
  %v1704 = vpack.c.bf16 %v1702, %v1700
  %v1705 = vld [vmem:[%s7] sm:$0xf]
  %v1706 = vld [vmem:[%s7 + $0x4] sm:$0xf]
  %v1707 = vld [vmem:[%s7 + $0x8] sm:$0xf]
  %v1708 = vld [vmem:[%s7 + $0xc] sm:$0xf]
  %v1709 = vld [vmem:[%s7 + $0x10] sm:$0xf]
  %v1710 = vld [vmem:[%s7 + $0x14] sm:$0xf]
  %v1711 = vld [vmem:[%s7 + $0x18] sm:$0xf]
  %v1712 = vld [vmem:[%s7 + $0x1c] sm:$0xf]
  %v1713 = vld [vmem:[%s7 + $0x20] sm:$0xf]
  %v1714 = vld [vmem:[%s7 + $0x24] sm:$0xf]
  %v1715 = vld [vmem:[%s7 + $0x28] sm:$0xf]
  %v1716 = vld [vmem:[%s7 + $0x2c] sm:$0xf]
  %v1717 = vld [vmem:[%s7 + $0x30] sm:$0xf]
  %v1718 = vld [vmem:[%s7 + $0x34] sm:$0xf]
  %v1719 = vld [vmem:[%s7 + $0x38] sm:$0xf]
  %v1720 = vld [vmem:[%s7 + $0x3c] sm:$0xf]
  %v1721 = vld [vmem:[%s7 + $0x40] sm:$0xf]
  %v1722 = vld [vmem:[%s7 + $0x44] sm:$0xf]
  %v1723 = vld [vmem:[%s7 + $0x48] sm:$0xf]
  %v1724 = vld [vmem:[%s7 + $0x4c] sm:$0xf]
  %v1725 = vld [vmem:[%s7 + $0x50] sm:$0xf]
  %v1726 = vld [vmem:[%s7 + $0x54] sm:$0xf]
  %v1727 = vld [vmem:[%s7 + $0x58] sm:$0xf]
  %v1728 = vld [vmem:[%s7 + $0x5c] sm:$0xf]
  %v1729 = vld [vmem:[%s7 + $0x60] sm:$0xf]
  %v1730 = vld [vmem:[%s7 + $0x64] sm:$0xf]
  %v1731 = vld [vmem:[%s7 + $0x68] sm:$0xf]
  %v1732 = vld [vmem:[%s7 + $0x6c] sm:$0xf]
  %v1733 = vld [vmem:[%s7 + $0x70] sm:$0xf]
  %v1734 = vld [vmem:[%s7 + $0x74] sm:$0xf]
  %v1735 = vld [vmem:[%s7 + $0x78] sm:$0xf]
  %v1736 = vld [vmem:[%s7 + $0x7c] sm:$0xf]
  %v1737 = vld [vmem:[%s8] sm:$0x1]
  %v1739 = vperm.slane %v1737, 0
  %v1773 = vunpack.c.l.b16 %v1705
  %v1774 = vunpack.c.l.b16 %v1706
  %v1775 = vunpack.c.l.b16 %v1707
  %v1776 = vunpack.c.l.b16 %v1708
  %v1777 = vunpack.c.l.b16 %v1709
  %v1778 = vunpack.c.l.b16 %v1710
  %v1779 = vunpack.c.l.b16 %v1711
  %v1780 = vunpack.c.l.b16 %v1712
  %v1781 = vunpack.c.l.b16 %v1713
  %v1782 = vunpack.c.l.b16 %v1714
  %v1783 = vunpack.c.l.b16 %v1715
  %v1784 = vunpack.c.l.b16 %v1716
  %v1785 = vunpack.c.l.b16 %v1717
  %v1786 = vunpack.c.l.b16 %v1718
  %v1787 = vunpack.c.l.b16 %v1719
  %v1788 = vunpack.c.l.b16 %v1720
  %v1789 = vunpack.c.l.b16 %v1721
  %v1790 = vunpack.c.l.b16 %v1722
  %v1791 = vunpack.c.l.b16 %v1723
  %v1792 = vunpack.c.l.b16 %v1724
  %v1793 = vunpack.c.l.b16 %v1725
  %v1794 = vunpack.c.l.b16 %v1726
  %v1795 = vunpack.c.l.b16 %v1727
  %v1796 = vunpack.c.l.b16 %v1728
  %v1797 = vunpack.c.l.b16 %v1729
  %v1798 = vunpack.c.l.b16 %v1730
  %v1799 = vunpack.c.l.b16 %v1731
  %v1800 = vunpack.c.l.b16 %v1732
  %v1801 = vunpack.c.l.b16 %v1733
  %v1802 = vunpack.c.l.b16 %v1734
  %v1803 = vunpack.c.l.b16 %v1735
  %v1804 = vunpack.c.l.b16 %v1736
  %v1805 = vpack.c.b16 %v1774, %v1773
  %v1806 = vpack.c.b16 %v1776, %v1775
  %v1807 = vpack.c.b16 %v1778, %v1777
  %v1808 = vpack.c.b16 %v1780, %v1779
  %v1809 = vpack.c.b16 %v1782, %v1781
  %v1810 = vpack.c.b16 %v1784, %v1783
  %v1811 = vpack.c.b16 %v1786, %v1785
  %v1812 = vpack.c.b16 %v1788, %v1787
  %v1813 = vpack.c.b16 %v1790, %v1789
  %v1814 = vpack.c.b16 %v1792, %v1791
  %v1815 = vpack.c.b16 %v1794, %v1793
  %v1816 = vpack.c.b16 %v1796, %v1795
  %v1817 = vpack.c.b16 %v1798, %v1797
  %v1818 = vpack.c.b16 %v1800, %v1799
  %v1819 = vpack.c.b16 %v1802, %v1801
  %v1820 = vpack.c.b16 %v1804, %v1803
  %1837 = vmatpush.bf16.msra.mxu0 %v1812
  %1838 = vmatpush.bf16.msra.mxu0 %v1811
  %1839 = vmatpush.bf16.msra.mxu0 %v1810
  %1840 = vmatpush.bf16.msra.mxu0 %v1809
  %1841 = vmatpush.bf16.msra.mxu0 %v1808
  %1842 = vmatpush.bf16.msra.mxu0 %v1807
  %1843 = vmatpush.bf16.msra.mxu0 %v1806
  %1844 = vmatpush.bf16.msra.mxu0 %v1805
  %1845 = vmatmul.bf16.gmra.mxu0 %v1703
  %v1846 = vpop.f32.mrf.mxu0
  %v1847 = vadd.f32 %v1739, %v1846
  %v1848 = vpop.f32.mrf.mxu0
  %v1849 = vadd.f32 %v1739, %v1848
  %1850 = vdwg.mxu0
  %1851 = vmatpush.bf16.msra.mxu0 %v1820
  %1852 = vmatpush.bf16.msra.mxu0 %v1819
  %1853 = vmatpush.bf16.msra.mxu0 %v1818
  %1854 = vmatpush.bf16.msra.mxu0 %v1817
  %1855 = vmatpush.bf16.msra.mxu0 %v1816
  %1856 = vmatpush.bf16.msra.mxu0 %v1815
  %1857 = vmatpush.bf16.msra.mxu0 %v1814
  %1858 = vmatpush.bf16.msra.mxu0 %v1813
  %1859 = vmatmul.bf16.gmra.mxu0 %v1704
  %v1860 = vpop.f32.mrf.mxu0
  %v1861 = vadd.f32 %v1847, %v1860
  %v1862 = vpop.f32.mrf.mxu0
  %v1863 = vadd.f32 %v1849, %v1862
  %1864 = vdwg.mxu0
  %v1865 = vmax.f32 %v1861, 0.0
  %v1866 = vmax.f32 %v1863, 0.0
  %v1867 = vpack.c.bf16 %v1866, %v1865
  %v1868 = vld [vmem:[%s9] sm:$0xf]
  %v1869 = vld [vmem:[%s9 + $0x4] sm:$0xf]
  %v1870 = vld [vmem:[%s9 + $0x8] sm:$0xf]
  %v1871 = vld [vmem:[%s9 + $0xc] sm:$0xf]
  %v1872 = vld [vmem:[%s9 + $0x10] sm:$0xf]
  %v1873 = vld [vmem:[%s9 + $0x14] sm:$0xf]
  %v1874 = vld [vmem:[%s9 + $0x18] sm:$0xf]
  %v1875 = vld [vmem:[%s9 + $0x1c] sm:$0xf]
  %v1876 = vld [vmem:[%s9 + $0x20] sm:$0xf]
  %v1877 = vld [vmem:[%s9 + $0x24] sm:$0xf]
  %v1878 = vld [vmem:[%s9 + $0x28] sm:$0xf]
  %v1879 = vld [vmem:[%s9 + $0x2c] sm:$0xf]
  %v1880 = vld [vmem:[%s9 + $0x30] sm:$0xf]
  %v1881 = vld [vmem:[%s9 + $0x34] sm:$0xf]
  %v1882 = vld [vmem:[%s9 + $0x38] sm:$0xf]
  %v1883 = vld [vmem:[%s9 + $0x3c] sm:$0xf]
  %v1884 = vld [vmem:[%s10] sm:$0x1]
  %v1886 = vperm.slane %v1884, 0
  %v1904 = vunpack.c.l.b16 %v1868
  %v1905 = vunpack.c.l.b16 %v1869
  %v1906 = vunpack.c.l.b16 %v1870
  %v1907 = vunpack.c.l.b16 %v1871
  %v1908 = vunpack.c.l.b16 %v1872
  %v1909 = vunpack.c.l.b16 %v1873
  %v1910 = vunpack.c.l.b16 %v1874
  %v1911 = vunpack.c.l.b16 %v1875
  %v1912 = vunpack.c.l.b16 %v1876
  %v1913 = vunpack.c.l.b16 %v1877
  %v1914 = vunpack.c.l.b16 %v1878
  %v1915 = vunpack.c.l.b16 %v1879
  %v1916 = vunpack.c.l.b16 %v1880
  %v1917 = vunpack.c.l.b16 %v1881
  %v1918 = vunpack.c.l.b16 %v1882
  %v1919 = vunpack.c.l.b16 %v1883
  %v1920 = vpack.c.b16 %v1905, %v1904
  %v1921 = vpack.c.b16 %v1907, %v1906
  %v1922 = vpack.c.b16 %v1909, %v1908
  %v1923 = vpack.c.b16 %v1911, %v1910
  %v1924 = vpack.c.b16 %v1913, %v1912
  %v1925 = vpack.c.b16 %v1915, %v1914
  %v1926 = vpack.c.b16 %v1917, %v1916
  %v1927 = vpack.c.b16 %v1919, %v1918
  %1936 = vmatpush.bf16.msra.mxu0 %v1927
  %1937 = vmatpush.bf16.msra.mxu0 %v1926
  %1938 = vmatpush.bf16.msra.mxu0 %v1925
  %1939 = vmatpush.bf16.msra.mxu0 %v1924
  %1940 = vmatpush.bf16.msra.mxu0 %v1923
  %1941 = vmatpush.bf16.msra.mxu0 %v1922
  %1942 = vmatpush.bf16.msra.mxu0 %v1921
  %1943 = vmatpush.bf16.msra.mxu0 %v1920
  %1944 = vmatmul.bf16.gmra.mxu0 %v1867
  %v1945 = vpop.f32.mrf.mxu0
  %v1946 = vadd.f32 %v1886, %v1945
  %v1947 = vpop.f32.mrf.mxu0
  %v1948 = vadd.f32 %v1886, %v1947
  %1949 = vdwg.mxu0
  %v1950 = vmax.f32 %v1946, 0.0
  %v1951 = vmax.f32 %v1948, 0.0
  %v1952 = vld [vmem:[%s11] sm:$0x1]
  %v1954 = vperm.slane %v1952, 0
  %v1956 = vmul.f32 %v1950, %v1954
  %v1957 = vmul.f32 %v1951, %v1954
  %vm1958 = vcmask 523264
  %v1959 = vsel %vm1958, %v1956, 0.0
  %1960 = vadd.xlane.f32.xlu0 %v1959
  %v1961 = vpop.xlane.xlu0 %1960
  %v1962 = vsel %vm1958, %v1957, 0.0
  %1963 = vadd.xlane.f32.xlu0 %v1962
  %v1964 = vpop.xlane.xlu0 %1963
  %v1965 = vld [vmem:[#allocation3] sm:$0x1]
  %v1967 = vperm.slane %v1965, 0
  %v1969 = vadd.f32 %v1961, %v1967
  %v1970 = vadd.f32 %v1964, %v1967
  %v1971 = vxor.u32 %v1969, 2147483648
  %v1972 = vxor.u32 %v1970, 2147483648
  %v1973 = vmul.f32 %v1971, 1.442695
  %v1974 = vpow.pop %v1973
  %v1975 = vmul.f32 %v1972, 1.442695
  %v1976 = vpow.pop %v1975
  %v1977 = vadd.f32 %v1974, 1.0
  %v1978 = vadd.f32 %v1976, 1.0
  %v1979 = vrcp.pop %v1977
  %v1980 = vmul.f32 %v1977, %v1979
  %v1981 = vsub.f32 1.0, %v1980
  %v1982 = vmul.f32 %v1979, %v1981
  %v1983 = vadd.f32 %v1979, %v1982
  %vm1984 = vweird.f32 %v1977
  %vm1985 = vweird.f32 %v1979
  %vm1986 = vmor %vm1984, %vm1985
  %v1987 = vsel %vm1986, %v1979, %v1983
  %v1988 = vand.u32 2147483647, %v1977
  %vm1989 = vcmp.eq.f32.partialorder %v1988, 8.507059e+37
  %v1990 = vand.u32 %v1977, 2147483648
  %v1991 = vor.u32 1.1754944e-38, %v1990
  %v1992 = vsel %vm1989, %v1991, %v1987
  %v1993 = vmul.f32 1.0, %v1992
  %v1994 = vrcp.pop %v1978
  %v1995 = vmul.f32 %v1978, %v1994
  %v1996 = vsub.f32 1.0, %v1995
  %v1997 = vmul.f32 %v1994, %v1996
  %v1998 = vadd.f32 %v1994, %v1997
  %vm1999 = vweird.f32 %v1978
  %vm2000 = vweird.f32 %v1994
  %vm2001 = vmor %vm1999, %vm2000
  %v2002 = vsel %vm2001, %v1994, %v1998
  %v2003 = vand.u32 2147483647, %v1978
  %vm2004 = vcmp.eq.f32.partialorder %v2003, 8.507059e+37
  %v2005 = vand.u32 %v1978, 2147483648
  %v2006 = vor.u32 1.1754944e-38, %v2005
  %v2007 = vsel %vm2004, %v2006, %v2002
  %v2008 = vmul.f32 1.0, %v2007
  %vm2009 = vcmask 7168
  %2010 = vst.msk [vmem:[%s13] sm:$0xff] %vm2009, %v1993
  %2011 = vst.msk [vmem:[%s13 + $0x8] sm:$0xff] %vm2009, %v2008
  // Predicated region
  $region54: #{failure_predictor_forward.1} parent=0 // pred_check
    _
  $region55: #{failure_predictor_forward.1} parent=0 // pred_check_branch
    %2013 = sbr.rel (0) target = $region57
  $region56: #{failure_predictor_forward.1} parent=0 // pred_region
    _
  $region57: #{failure_predictor_forward.1} parent=0 // pred_fallthru
    _
  // Predicated region
  $region58: #{failure_predictor_forward.1} parent=0 // pred_check
    _
  $region59: #{failure_predictor_forward.1} parent=0 // pred_check_branch
    %2015 = sbr.rel (0) target = $region61
  $region60: #{failure_predictor_forward.1} parent=0 // pred_region
    _
  $region61: #{failure_predictor_forward.1} parent=0 // pred_fallthru
    _

</llo_original>
